<compile_context>
chip_gen: v6e
topology: v6e:2x2x1
jax: 0.10.0
libtpu: 0.0.40
codegen_flags: <defaults>
</compile_context>

<pallas_src>
import jax
import jax.numpy as jnp
import numpy as np
from jax.experimental import pallas as pl
from jax.experimental.pallas import tpu as pltpu

HIDDEN_DIM = 32  # hidden_dim of the module (closed over by the kernel)


def _gate_cell(gates, c):
    """PyTorch LSTM gate order: i, f, g, o.  gates: [N, 4H], c: [N, H]."""
    H = HIDDEN_DIM
    i = jax.nn.sigmoid(gates[:, 0 * H:1 * H])
    f = jax.nn.sigmoid(gates[:, 1 * H:2 * H])
    g = jnp.tanh(gates[:, 2 * H:3 * H])
    o = jax.nn.sigmoid(gates[:, 3 * H:4 * H])
    c_new = f * c + i * g
    h_new = o * jnp.tanh(c_new)
    return h_new, c_new


def temporal_lstm_layer(x, params):
    """x: [B, T, D_in] float32 (batch_first, like the PyTorch module)."""
    B, T, D = x.shape
    H = HIDDEN_DIM

    # time-major flatten: row t*B + b  <->  x[b, t, :]
    x_flat = jnp.transpose(x, (1, 0, 2)).astype(jnp.float32).reshape(T * B, D)

    def wT(w):  # torch-layout weight [out, in] -> [in, out]
        return jnp.asarray(w, jnp.float32).T

    def bias(bi, bh):  # combined LSTM bias, 2-D for clean VMEM layout
        return (jnp.asarray(bi, jnp.float32) + jnp.asarray(bh, jnp.float32)).reshape(1, -1)

    # layer-0 input weights for both directions concatenated on the gate (lane) axis,
    # so the hoisted input projection is a single [T*B, D] x [D, 8H] matmul (256 lanes).
    wih0 = jnp.concatenate([wT(params["wih_l0"]), wT(params["wih_l0r"])], axis=1)   # [D, 8H]
    b0 = jnp.concatenate([bias(params["bih_l0"], params["bhh_l0"]),
                          bias(params["bih_l0r"], params["bhh_l0r"])], axis=1)      # [1, 8H]
    # layer-0 recurrent weights vstacked for the block-diagonal fused recurrence
    whh0 = jnp.concatenate([wT(params["whh_l0"]), wT(params["whh_l0r"])], axis=0)   # [2H, 4H]

    args = (
        x_flat, wih0, b0, whh0,
        wT(params["wih_l1"]), bias(params["bih_l1"], params["bhh_l1"]), wT(params["whh_l1"]),
        wT(params["wih_l1r"]), bias(params["bih_l1r"], params["bhh_l1r"]),
        wT(params["w_lin"]), jnp.asarray(params["b_lin"], jnp.float32).reshape(1, -1),
    )
    # NOTE: params["whh_l1r"] is mathematically unused (the reverse layer-1 output at the
    # last timestep is its first step with zero initial state), so it is not passed.

    def kernel(x_ref, wih0_ref, b0_ref, whh0_ref,
               wih1f_ref, b1f_ref, whh1f_ref,
               wih1b_ref, b1b_ref, wlin_ref, blin_ref, out_ref):
        f32 = jnp.float32

        # ---- layer 0: hoisted input->gate projection (both directions, one matmul) ----
        px0 = jnp.dot(x_ref[...], wih0_ref[...],
                      preferred_element_type=f32) + b0_ref[...]        # [T*B, 8H]
        pf = px0[:, 0:4 * H]          # forward pre-activations (bias folded)
        pb = px0[:, 4 * H:8 * H]      # backward pre-activations (bias folded)

        whh0_v = whh0_ref[...]        # [2H, 4H] == [Whh_fwd ; Whh_bwd]
        zB = jnp.zeros((B, H), f32)
        h_f = zB
        h_b = zB
        ccat = jnp.zeros((2 * B, H), f32)

        outs_f = [None] * T
        outs_b = [None] * T
        # Fused fwd+bwd recurrence: block-diagonal [h_f 0; 0 h_b] so both directions share
        # one h@W_hh matmul and one gate pass per step. Fully unrolled (static indices).
        for s in range(T):
            p = jnp.concatenate([pf[s * B:(s + 1) * B, :],
                                 pb[(T - 1 - s) * B:(T - s) * B, :]], axis=0)     # [2B, 4H]
            hblk = jnp.concatenate(
                [jnp.concatenate([h_f, zB], axis=1),
                 jnp.concatenate([zB, h_b], axis=1)], axis=0)                     # [2B, 2H]
            gates = jnp.dot(hblk, whh0_v, preferred_element_type=f32) + p
            hcat, ccat = _gate_cell(gates, ccat)
            h_f = hcat[0:B, :]
            h_b = hcat[B:2 * B, :]
            outs_f[s] = h_f              # forward output at time s
            outs_b[T - 1 - s] = h_b      # backward output at time T-1-s

        # layer-0 output sequence in layer-1 input layout: row t*B+b = [h_f(t,b), h_b(t,b)]
        seq0 = jnp.concatenate(
            [jnp.concatenate([outs_f[t], outs_b[t]], axis=1) for t in range(T)],
            axis=0)                                                                # [T*B, 2H]

        # ---- layer 1 forward: hoisted input projection; loop only does h@W_hh ----
        p1 = jnp.dot(seq0, wih1f_ref[...], preferred_element_type=f32) + b1f_ref[...]  # [T*B, 4H]
        whh1f = whh1f_ref[...]
        h1 = zB
        c1 = zB
        for t in range(T):
            gates = jnp.dot(h1, whh1f, preferred_element_type=f32) + p1[t * B:(t + 1) * B, :]
            h1, c1 = _gate_cell(gates, c1)

        # ---- layer 1 backward: last-timestep output is its *first* step with zero state,
        # so W_hh_reverse contributes exactly nothing and one cell step is exact. ----
        seq_last = seq0[(T - 1) * B:T * B, :]
        gates_b = jnp.dot(seq_last, wih1b_ref[...], preferred_element_type=f32) + b1b_ref[...]
        h1b, _ = _gate_cell(gates_b, zB)

        # ---- evolving_layer: Linear(2H -> H) + ReLU ----
        last = jnp.concatenate([h1, h1b], axis=1)                                  # [B, 2H]
        y = jnp.dot(last, wlin_ref[...], preferred_element_type=f32) + blin_ref[...]
        # TODO(synk): training-mode nn.Dropout (p=0.2) not implemented; eval mode == identity.
        out_ref[...] = jnp.maximum(y, 0.0)

    vmem = pl.BlockSpec(memory_space=pltpu.MemorySpace.VMEM)
    # Single program (no grid): total footprint << VMEM on every TPU generation.
    # For production batch sizes, add a batch grid with dimension_semantics=("parallel",)
    # to use both v7x TensorCores.
    return pl.pallas_call(
        kernel,
        out_shape=jax.ShapeDtypeStruct((B, H), jnp.float32),
        in_specs=[vmem] * len(args),
        out_specs=vmem,
    )(*args)


# ----------------------------- parameters & reference -----------------------------

def init_params(key, input_dim, hidden_dim):
    k = 1.0 / np.sqrt(hidden_dim)
    names_shapes = [
        ("wih_l0",  (4 * hidden_dim, input_dim)),
        ("whh_l0",  (4 * hidden_dim, hidden_dim)),
        ("bih_l0",  (4 * hidden_dim,)),
        ("bhh_l0",  (4 * hidden_dim,)),
        ("wih_l0r", (4 * hidden_dim, input_dim)),
        ("whh_l0r", (4 * hidden_dim, hidden_dim)),
        ("bih_l0r", (4 * hidden_dim,)),
        ("bhh_l0r", (4 * hidden_dim,)),
        ("wih_l1",  (4 * hidden_dim, 2 * hidden_dim)),
        ("whh_l1",  (4 * hidden_dim, hidden_dim)),
        ("bih_l1",  (4 * hidden_dim,)),
        ("bhh_l1",  (4 * hidden_dim,)),
        ("wih_l1r", (4 * hidden_dim, 2 * hidden_dim)),
        ("whh_l1r", (4 * hidden_dim, hidden_dim)),
        ("bih_l1r", (4 * hidden_dim,)),
        ("bhh_l1r", (4 * hidden_dim,)),
        ("w_lin",   (hidden_dim, 2 * hidden_dim)),
        ("b_lin",   (hidden_dim,)),
    ]
    keys = jax.random.split(key, len(names_shapes))
    return {
        name: jax.random.uniform(kk, shape, jnp.float32, -k, k)
        for kk, (name, shape) in zip(keys, names_shapes)
    }


def reference_forward(x, params):
    """Pure-JAX reference matching PyTorch nn.LSTM(bidirectional, 2 layers) + Linear + ReLU."""
    H = HIDDEN_DIM
    B, T, _ = x.shape

    def run_dir(inputs, wih, whh, bih, bhh, reverse):
        b = bih + bhh
        h = jnp.zeros((B, H), jnp.float32)
        c = jnp.zeros((B, H), jnp.float32)
        outs = [None] * T
        order = range(T - 1, -1, -1) if reverse else range(T)
        for t in order:
            gates = inputs[:, t, :] @ wih.T + h @ whh.T + b
            h, c = _gate_cell(gates, c)
            outs[t] = h
        return jnp.stack(outs, axis=1)  # [B, T, H]

    l0 = jnp.concatenate(
        [run_dir(x, params["wih_l0"],  params["whh_l0"],  params["bih_l0"],  params["bhh_l0"],  False),
         run_dir(x, params["wih_l0r"], params["whh_l0r"], params["bih_l0r"], params["bhh_l0r"], True)],
        axis=-1)
    l1 = jnp.concatenate(
        [run_dir(l0, params["wih_l1"],  params["whh_l1"],  params["bih_l1"],  params["bhh_l1"],  False),
         run_dir(l0, params["wih_l1r"], params["whh_l1r"], params["bih_l1r"], params["bhh_l1r"], True)],
        axis=-1)
    last = l1[:, -1, :]
    return jnp.maximum(last @ params["w_lin"].T + params["b_lin"], 0.0)


if __name__ == "__main__":
    B, T, D_IN = 2, 8, 16
    key = jax.random.PRNGKey(0)
    kx, kp = jax.random.split(key)
    x = jax.random.normal(kx, (B, T, D_IN), jnp.float32)
    params = init_params(kp, D_IN, HIDDEN_DIM)

    out = jax.block_until_ready(temporal_lstm_layer(x, params))
    assert out.shape == (B, HIDDEN_DIM), out.shape

    ref = reference_forward(x, params)
    np.testing.assert_allclose(np.asarray(out), np.asarray(ref), rtol=2e-3, atol=2e-3)

    print("KERNEL_OK")
</pallas_src>

<mosaic_0001>
module attributes {stable_mosaic.version = 11 : i64} {
  func.func @kernel(%arg0: memref<16x16xf32, #tpu.memory_space<vmem>>, %arg1: memref<16x256xf32, #tpu.memory_space<vmem>>, %arg2: memref<1x256xf32, #tpu.memory_space<vmem>>, %arg3: memref<64x128xf32, #tpu.memory_space<vmem>>, %arg4: memref<64x128xf32, #tpu.memory_space<vmem>>, %arg5: memref<1x128xf32, #tpu.memory_space<vmem>>, %arg6: memref<32x128xf32, #tpu.memory_space<vmem>>, %arg7: memref<64x128xf32, #tpu.memory_space<vmem>>, %arg8: memref<1x128xf32, #tpu.memory_space<vmem>>, %arg9: memref<64x32xf32, #tpu.memory_space<vmem>>, %arg10: memref<1x32xf32, #tpu.memory_space<vmem>>, %arg11: memref<2x32xf32, #tpu.memory_space<vmem>>) attributes {dimension_semantics = [], scalar_prefetch = 0 : i64, scratch_operands = 0 : i64, tpu.core_type = #tpu.core_type<tc>} {
    %c0 = arith.constant 0 : index
    %c0_0 = arith.constant 0 : index
    %0 = vector.load %arg0[%c0, %c0_0] : memref<16x16xf32, #tpu.memory_space<vmem>>, vector<16x16xf32>
    %c0_1 = arith.constant 0 : index
    %c0_2 = arith.constant 0 : index
    %1 = vector.load %arg1[%c0_1, %c0_2] : memref<16x256xf32, #tpu.memory_space<vmem>>, vector<16x256xf32>
    %cst = arith.constant dense<0.000000e+00> : vector<16x256xf32>
    %2 = tpu.matmul %0, %1, %cst {dimension_numbers = #tpu.dot_dimension_numbers<[1], [0], [0], [1], [0, 0, 1, 1], [], []>} : vector<16x16xf32>, vector<16x256xf32>, vector<16x256xf32> -> vector<16x256xf32>
    %c0_3 = arith.constant 0 : index
    %c0_4 = arith.constant 0 : index
    %3 = vector.load %arg2[%c0_3, %c0_4] : memref<1x256xf32, #tpu.memory_space<vmem>>, vector<1x256xf32>
    %4 = vector.broadcast %3 : vector<1x256xf32> to vector<16x256xf32>
    %5 = arith.addf %2, %4 : vector<16x256xf32>
    %6 = vector.extract_strided_slice %5 {offsets = [0, 0], sizes = [16, 128], strides = [1, 1]} : vector<16x256xf32> to vector<16x128xf32>
    %7 = vector.extract_strided_slice %5 {offsets = [0, 128], sizes = [16, 128], strides = [1, 1]} : vector<16x256xf32> to vector<16x128xf32>
    %c0_5 = arith.constant 0 : index
    %c0_6 = arith.constant 0 : index
    %8 = vector.load %arg3[%c0_5, %c0_6] : memref<64x128xf32, #tpu.memory_space<vmem>>, vector<64x128xf32>
    %cst_7 = arith.constant 0.000000e+00 : f32
    %9 = vector.broadcast %cst_7 : f32 to vector<2x32xf32>
    %cst_8 = arith.constant 0.000000e+00 : f32
    %10 = vector.broadcast %cst_8 : f32 to vector<4x32xf32>
    %11 = vector.extract_strided_slice %6 {offsets = [0, 0], sizes = [2, 128], strides = [1, 1]} : vector<16x128xf32> to vector<2x128xf32>
    %12 = vector.extract_strided_slice %7 {offsets = [14, 0], sizes = [2, 128], strides = [1, 1]} : vector<16x128xf32> to vector<2x128xf32>
    %13 = tpu.concatenate %11, %12 in 0 : vector<2x128xf32>, vector<2x128xf32> -> vector<4x128xf32>
    %14 = tpu.concatenate %9, %9 in 1 : vector<2x32xf32>, vector<2x32xf32> -> vector<2x64xf32>
    %15 = tpu.concatenate %9, %9 in 1 : vector<2x32xf32>, vector<2x32xf32> -> vector<2x64xf32>
    %16 = tpu.concatenate %14, %15 in 0 : vector<2x64xf32>, vector<2x64xf32> -> vector<4x64xf32>
    %cst_9 = arith.constant dense<0.000000e+00> : vector<4x128xf32>
    %17 = tpu.matmul %16, %8, %cst_9 {dimension_numbers = #tpu.dot_dimension_numbers<[1], [0], [0], [1], [0, 0, 1, 1], [], []>} : vector<4x64xf32>, vector<64x128xf32>, vector<4x128xf32> -> vector<4x128xf32>
    %18 = arith.addf %17, %13 : vector<4x128xf32>
    %19 = vector.extract_strided_slice %18 {offsets = [0, 0], sizes = [4, 32], strides = [1, 1]} : vector<4x128xf32> to vector<4x32xf32>
    %20 = arith.negf %19 : vector<4x32xf32>
    %21 = math.exp %20 : vector<4x32xf32>
    %cst_10 = arith.constant 1.000000e+00 : f32
    %22 = vector.broadcast %cst_10 : f32 to vector<4x32xf32>
    %23 = arith.addf %22, %21 : vector<4x32xf32>
    %24 = arith.divf %22, %23 : vector<4x32xf32>
    %25 = vector.extract_strided_slice %18 {offsets = [0, 32], sizes = [4, 32], strides = [1, 1]} : vector<4x128xf32> to vector<4x32xf32>
    %26 = arith.negf %25 : vector<4x32xf32>
    %27 = math.exp %26 : vector<4x32xf32>
    %cst_11 = arith.constant 1.000000e+00 : f32
    %28 = vector.broadcast %cst_11 : f32 to vector<4x32xf32>
    %29 = arith.addf %28, %27 : vector<4x32xf32>
    %30 = arith.divf %28, %29 : vector<4x32xf32>
    %31 = vector.extract_strided_slice %18 {offsets = [0, 64], sizes = [4, 32], strides = [1, 1]} : vector<4x128xf32> to vector<4x32xf32>
    %32 = math.tanh %31 : vector<4x32xf32>
    %33 = vector.extract_strided_slice %18 {offsets = [0, 96], sizes = [4, 32], strides = [1, 1]} : vector<4x128xf32> to vector<4x32xf32>
    %34 = arith.negf %33 : vector<4x32xf32>
    %35 = math.exp %34 : vector<4x32xf32>
    %cst_12 = arith.constant 1.000000e+00 : f32
    %36 = vector.broadcast %cst_12 : f32 to vector<4x32xf32>
    %37 = arith.addf %36, %35 : vector<4x32xf32>
    %38 = arith.divf %36, %37 : vector<4x32xf32>
    %39 = arith.mulf %30, %10 : vector<4x32xf32>
    %40 = arith.mulf %24, %32 : vector<4x32xf32>
    %41 = arith.addf %39, %40 : vector<4x32xf32>
    %42 = math.tanh %41 : vector<4x32xf32>
    %43 = arith.mulf %38, %42 : vector<4x32xf32>
    %44 = vector.extract_strided_slice %43 {offsets = [0, 0], sizes = [2, 32], strides = [1, 1]} : vector<4x32xf32> to vector<2x32xf32>
    %45 = vector.extract_strided_slice %43 {offsets = [2, 0], sizes = [2, 32], strides = [1, 1]} : vector<4x32xf32> to vector<2x32xf32>
    %46 = vector.extract_strided_slice %6 {offsets = [2, 0], sizes = [2, 128], strides = [1, 1]} : vector<16x128xf32> to vector<2x128xf32>
    %47 = vector.extract_strided_slice %7 {offsets = [12, 0], sizes = [2, 128], strides = [1, 1]} : vector<16x128xf32> to vector<2x128xf32>
    %48 = tpu.concatenate %46, %47 in 0 : vector<2x128xf32>, vector<2x128xf32> -> vector<4x128xf32>
    %49 = tpu.concatenate %44, %9 in 1 : vector<2x32xf32>, vector<2x32xf32> -> vector<2x64xf32>
    %50 = tpu.concatenate %9, %45 in 1 : vector<2x32xf32>, vector<2x32xf32> -> vector<2x64xf32>
    %51 = tpu.concatenate %49, %50 in 0 : vector<2x64xf32>, vector<2x64xf32> -> vector<4x64xf32>
    %cst_13 = arith.constant dense<0.000000e+00> : vector<4x128xf32>
    %52 = tpu.matmul %51, %8, %cst_13 {dimension_numbers = #tpu.dot_dimension_numbers<[1], [0], [0], [1], [0, 0, 1, 1], [], []>} : vector<4x64xf32>, vector<64x128xf32>, vector<4x128xf32> -> vector<4x128xf32>
    %53 = arith.addf %52, %48 : vector<4x128xf32>
    %54 = vector.extract_strided_slice %53 {offsets = [0, 0], sizes = [4, 32], strides = [1, 1]} : vector<4x128xf32> to vector<4x32xf32>
    %55 = arith.negf %54 : vector<4x32xf32>
    %56 = math.exp %55 : vector<4x32xf32>
    %cst_14 = arith.constant 1.000000e+00 : f32
    %57 = vector.broadcast %cst_14 : f32 to vector<4x32xf32>
    %58 = arith.addf %57, %56 : vector<4x32xf32>
    %59 = arith.divf %57, %58 : vector<4x32xf32>
    %60 = vector.extract_strided_slice %53 {offsets = [0, 32], sizes = [4, 32], strides = [1, 1]} : vector<4x128xf32> to vector<4x32xf32>
    %61 = arith.negf %60 : vector<4x32xf32>
    %62 = math.exp %61 : vector<4x32xf32>
    %cst_15 = arith.constant 1.000000e+00 : f32
    %63 = vector.broadcast %cst_15 : f32 to vector<4x32xf32>
    %64 = arith.addf %63, %62 : vector<4x32xf32>
    %65 = arith.divf %63, %64 : vector<4x32xf32>
    %66 = vector.extract_strided_slice %53 {offsets = [0, 64], sizes = [4, 32], strides = [1, 1]} : vector<4x128xf32> to vector<4x32xf32>
    %67 = math.tanh %66 : vector<4x32xf32>
    %68 = vector.extract_strided_slice %53 {offsets = [0, 96], sizes = [4, 32], strides = [1, 1]} : vector<4x128xf32> to vector<4x32xf32>
    %69 = arith.negf %68 : vector<4x32xf32>
    %70 = math.exp %69 : vector<4x32xf32>
    %cst_16 = arith.constant 1.000000e+00 : f32
    %71 = vector.broadcast %cst_16 : f32 to vector<4x32xf32>
    %72 = arith.addf %71, %70 : vector<4x32xf32>
    %73 = arith.divf %71, %72 : vector<4x32xf32>
    %74 = arith.mulf %65, %41 : vector<4x32xf32>
    %75 = arith.mulf %59, %67 : vector<4x32xf32>
    %76 = arith.addf %74, %75 : vector<4x32xf32>
    %77 = math.tanh %76 : vector<4x32xf32>
    %78 = arith.mulf %73, %77 : vector<4x32xf32>
    %79 = vector.extract_strided_slice %78 {offsets = [0, 0], sizes = [2, 32], strides = [1, 1]} : vector<4x32xf32> to vector<2x32xf32>
    %80 = vector.extract_strided_slice %78 {offsets = [2, 0], sizes = [2, 32], strides = [1, 1]} : vector<4x32xf32> to vector<2x32xf32>
    %81 = vector.extract_strided_slice %6 {offsets = [4, 0], sizes = [2, 128], strides = [1, 1]} : vector<16x128xf32> to vector<2x128xf32>
    %82 = vector.extract_strided_slice %7 {offsets = [10, 0], sizes = [2, 128], strides = [1, 1]} : vector<16x128xf32> to vector<2x128xf32>
    %83 = tpu.concatenate %81, %82 in 0 : vector<2x128xf32>, vector<2x128xf32> -> vector<4x128xf32>
    %84 = tpu.concatenate %79, %9 in 1 : vector<2x32xf32>, vector<2x32xf32> -> vector<2x64xf32>
    %85 = tpu.concatenate %9, %80 in 1 : vector<2x32xf32>, vector<2x32xf32> -> vector<2x64xf32>
    %86 = tpu.concatenate %84, %85 in 0 : vector<2x64xf32>, vector<2x64xf32> -> vector<4x64xf32>
    %cst_17 = arith.constant dense<0.000000e+00> : vector<4x128xf32>
    %87 = tpu.matmul %86, %8, %cst_17 {dimension_numbers = #tpu.dot_dimension_numbers<[1], [0], [0], [1], [0, 0, 1, 1], [], []>} : vector<4x64xf32>, vector<64x128xf32>, vector<4x128xf32> -> vector<4x128xf32>
    %88 = arith.addf %87, %83 : vector<4x128xf32>
    %89 = vector.extract_strided_slice %88 {offsets = [0, 0], sizes = [4, 32], strides = [1, 1]} : vector<4x128xf32> to vector<4x32xf32>
    %90 = arith.negf %89 : vector<4x32xf32>
    %91 = math.exp %90 : vector<4x32xf32>
    %cst_18 = arith.constant 1.000000e+00 : f32
    %92 = vector.broadcast %cst_18 : f32 to vector<4x32xf32>
    %93 = arith.addf %92, %91 : vector<4x32xf32>
    %94 = arith.divf %92, %93 : vector<4x32xf32>
    %95 = vector.extract_strided_slice %88 {offsets = [0, 32], sizes = [4, 32], strides = [1, 1]} : vector<4x128xf32> to vector<4x32xf32>
    %96 = arith.negf %95 : vector<4x32xf32>
    %97 = math.exp %96 : vector<4x32xf32>
    %cst_19 = arith.constant 1.000000e+00 : f32
    %98 = vector.broadcast %cst_19 : f32 to vector<4x32xf32>
    %99 = arith.addf %98, %97 : vector<4x32xf32>
    %100 = arith.divf %98, %99 : vector<4x32xf32>
    %101 = vector.extract_strided_slice %88 {offsets = [0, 64], sizes = [4, 32], strides = [1, 1]} : vector<4x128xf32> to vector<4x32xf32>
    %102 = math.tanh %101 : vector<4x32xf32>
    %103 = vector.extract_strided_slice %88 {offsets = [0, 96], sizes = [4, 32], strides = [1, 1]} : vector<4x128xf32> to vector<4x32xf32>
    %104 = arith.negf %103 : vector<4x32xf32>
    %105 = math.exp %104 : vector<4x32xf32>
    %cst_20 = arith.constant 1.000000e+00 : f32
    %106 = vector.broadcast %cst_20 : f32 to vector<4x32xf32>
    %107 = arith.addf %106, %105 : vector<4x32xf32>
    %108 = arith.divf %106, %107 : vector<4x32xf32>
    %109 = arith.mulf %100, %76 : vector<4x32xf32>
    %110 = arith.mulf %94, %102 : vector<4x32xf32>
    %111 = arith.addf %109, %110 : vector<4x32xf32>
    %112 = math.tanh %111 : vector<4x32xf32>
    %113 = arith.mulf %108, %112 : vector<4x32xf32>
    %114 = vector.extract_strided_slice %113 {offsets = [0, 0], sizes = [2, 32], strides = [1, 1]} : vector<4x32xf32> to vector<2x32xf32>
    %115 = vector.extract_strided_slice %113 {offsets = [2, 0], sizes = [2, 32], strides = [1, 1]} : vector<4x32xf32> to vector<2x32xf32>
    %116 = vector.extract_strided_slice %6 {offsets = [6, 0], sizes = [2, 128], strides = [1, 1]} : vector<16x128xf32> to vector<2x128xf32>
    %117 = vector.extract_strided_slice %7 {offsets = [8, 0], sizes = [2, 128], strides = [1, 1]} : vector<16x128xf32> to vector<2x128xf32>
    %118 = tpu.concatenate %116, %117 in 0 : vector<2x128xf32>, vector<2x128xf32> -> vector<4x128xf32>
    %119 = tpu.concatenate %114, %9 in 1 : vector<2x32xf32>, vector<2x32xf32> -> vector<2x64xf32>
    %120 = tpu.concatenate %9, %115 in 1 : vector<2x32xf32>, vector<2x32xf32> -> vector<2x64xf32>
    %121 = tpu.concatenate %119, %120 in 0 : vector<2x64xf32>, vector<2x64xf32> -> vector<4x64xf32>
    %cst_21 = arith.constant dense<0.000000e+00> : vector<4x128xf32>
    %122 = tpu.matmul %121, %8, %cst_21 {dimension_numbers = #tpu.dot_dimension_numbers<[1], [0], [0], [1], [0, 0, 1, 1], [], []>} : vector<4x64xf32>, vector<64x128xf32>, vector<4x128xf32> -> vector<4x128xf32>
    %123 = arith.addf %122, %118 : vector<4x128xf32>
    %124 = vector.extract_strided_slice %123 {offsets = [0, 0], sizes = [4, 32], strides = [1, 1]} : vector<4x128xf32> to vector<4x32xf32>
    %125 = arith.negf %124 : vector<4x32xf32>
    %126 = math.exp %125 : vector<4x32xf32>
    %cst_22 = arith.constant 1.000000e+00 : f32
    %127 = vector.broadcast %cst_22 : f32 to vector<4x32xf32>
    %128 = arith.addf %127, %126 : vector<4x32xf32>
    %129 = arith.divf %127, %128 : vector<4x32xf32>
    %130 = vector.extract_strided_slice %123 {offsets = [0, 32], sizes = [4, 32], strides = [1, 1]} : vector<4x128xf32> to vector<4x32xf32>
    %131 = arith.negf %130 : vector<4x32xf32>
    %132 = math.exp %131 : vector<4x32xf32>
    %cst_23 = arith.constant 1.000000e+00 : f32
    %133 = vector.broadcast %cst_23 : f32 to vector<4x32xf32>
    %134 = arith.addf %133, %132 : vector<4x32xf32>
    %135 = arith.divf %133, %134 : vector<4x32xf32>
    %136 = vector.extract_strided_slice %123 {offsets = [0, 64], sizes = [4, 32], strides = [1, 1]} : vector<4x128xf32> to vector<4x32xf32>
    %137 = math.tanh %136 : vector<4x32xf32>
    %138 = vector.extract_strided_slice %123 {offsets = [0, 96], sizes = [4, 32], strides = [1, 1]} : vector<4x128xf32> to vector<4x32xf32>
    %139 = arith.negf %138 : vector<4x32xf32>
    %140 = math.exp %139 : vector<4x32xf32>
    %cst_24 = arith.constant 1.000000e+00 : f32
    %141 = vector.broadcast %cst_24 : f32 to vector<4x32xf32>
    %142 = arith.addf %141, %140 : vector<4x32xf32>
    %143 = arith.divf %141, %142 : vector<4x32xf32>
    %144 = arith.mulf %135, %111 : vector<4x32xf32>
    %145 = arith.mulf %129, %137 : vector<4x32xf32>
    %146 = arith.addf %144, %145 : vector<4x32xf32>
    %147 = math.tanh %146 : vector<4x32xf32>
    %148 = arith.mulf %143, %147 : vector<4x32xf32>
    %149 = vector.extract_strided_slice %148 {offsets = [0, 0], sizes = [2, 32], strides = [1, 1]} : vector<4x32xf32> to vector<2x32xf32>
    %150 = vector.extract_strided_slice %148 {offsets = [2, 0], sizes = [2, 32], strides = [1, 1]} : vector<4x32xf32> to vector<2x32xf32>
    %151 = vector.extract_strided_slice %6 {offsets = [8, 0], sizes = [2, 128], strides = [1, 1]} : vector<16x128xf32> to vector<2x128xf32>
    %152 = vector.extract_strided_slice %7 {offsets = [6, 0], sizes = [2, 128], strides = [1, 1]} : vector<16x128xf32> to vector<2x128xf32>
    %153 = tpu.concatenate %151, %152 in 0 : vector<2x128xf32>, vector<2x128xf32> -> vector<4x128xf32>
    %154 = tpu.concatenate %149, %9 in 1 : vector<2x32xf32>, vector<2x32xf32> -> vector<2x64xf32>
    %155 = tpu.concatenate %9, %150 in 1 : vector<2x32xf32>, vector<2x32xf32> -> vector<2x64xf32>
    %156 = tpu.concatenate %154, %155 in 0 : vector<2x64xf32>, vector<2x64xf32> -> vector<4x64xf32>
    %cst_25 = arith.constant dense<0.000000e+00> : vector<4x128xf32>
    %157 = tpu.matmul %156, %8, %cst_25 {dimension_numbers = #tpu.dot_dimension_numbers<[1], [0], [0], [1], [0, 0, 1, 1], [], []>} : vector<4x64xf32>, vector<64x128xf32>, vector<4x128xf32> -> vector<4x128xf32>
    %158 = arith.addf %157, %153 : vector<4x128xf32>
    %159 = vector.extract_strided_slice %158 {offsets = [0, 0], sizes = [4, 32], strides = [1, 1]} : vector<4x128xf32> to vector<4x32xf32>
    %160 = arith.negf %159 : vector<4x32xf32>
    %161 = math.exp %160 : vector<4x32xf32>
    %cst_26 = arith.constant 1.000000e+00 : f32
    %162 = vector.broadcast %cst_26 : f32 to vector<4x32xf32>
    %163 = arith.addf %162, %161 : vector<4x32xf32>
    %164 = arith.divf %162, %163 : vector<4x32xf32>
    %165 = vector.extract_strided_slice %158 {offsets = [0, 32], sizes = [4, 32], strides = [1, 1]} : vector<4x128xf32> to vector<4x32xf32>
    %166 = arith.negf %165 : vector<4x32xf32>
    %167 = math.exp %166 : vector<4x32xf32>
    %cst_27 = arith.constant 1.000000e+00 : f32
    %168 = vector.broadcast %cst_27 : f32 to vector<4x32xf32>
    %169 = arith.addf %168, %167 : vector<4x32xf32>
    %170 = arith.divf %168, %169 : vector<4x32xf32>
    %171 = vector.extract_strided_slice %158 {offsets = [0, 64], sizes = [4, 32], strides = [1, 1]} : vector<4x128xf32> to vector<4x32xf32>
    %172 = math.tanh %171 : vector<4x32xf32>
    %173 = vector.extract_strided_slice %158 {offsets = [0, 96], sizes = [4, 32], strides = [1, 1]} : vector<4x128xf32> to vector<4x32xf32>
    %174 = arith.negf %173 : vector<4x32xf32>
    %175 = math.exp %174 : vector<4x32xf32>
    %cst_28 = arith.constant 1.000000e+00 : f32
    %176 = vector.broadcast %cst_28 : f32 to vector<4x32xf32>
    %177 = arith.addf %176, %175 : vector<4x32xf32>
    %178 = arith.divf %176, %177 : vector<4x32xf32>
    %179 = arith.mulf %170, %146 : vector<4x32xf32>
    %180 = arith.mulf %164, %172 : vector<4x32xf32>
    %181 = arith.addf %179, %180 : vector<4x32xf32>
    %182 = math.tanh %181 : vector<4x32xf32>
    %183 = arith.mulf %178, %182 : vector<4x32xf32>
    %184 = vector.extract_strided_slice %183 {offsets = [0, 0], sizes = [2, 32], strides = [1, 1]} : vector<4x32xf32> to vector<2x32xf32>
    %185 = vector.extract_strided_slice %183 {offsets = [2, 0], sizes = [2, 32], strides = [1, 1]} : vector<4x32xf32> to vector<2x32xf32>
    %186 = vector.extract_strided_slice %6 {offsets = [10, 0], sizes = [2, 128], strides = [1, 1]} : vector<16x128xf32> to vector<2x128xf32>
    %187 = vector.extract_strided_slice %7 {offsets = [4, 0], sizes = [2, 128], strides = [1, 1]} : vector<16x128xf32> to vector<2x128xf32>
    %188 = tpu.concatenate %186, %187 in 0 : vector<2x128xf32>, vector<2x128xf32> -> vector<4x128xf32>
    %189 = tpu.concatenate %184, %9 in 1 : vector<2x32xf32>, vector<2x32xf32> -> vector<2x64xf32>
    %190 = tpu.concatenate %9, %185 in 1 : vector<2x32xf32>, vector<2x32xf32> -> vector<2x64xf32>
    %191 = tpu.concatenate %189, %190 in 0 : vector<2x64xf32>, vector<2x64xf32> -> vector<4x64xf32>
    %cst_29 = arith.constant dense<0.000000e+00> : vector<4x128xf32>
    %192 = tpu.matmul %191, %8, %cst_29 {dimension_numbers = #tpu.dot_dimension_numbers<[1], [0], [0], [1], [0, 0, 1, 1], [], []>} : vector<4x64xf32>, vector<64x128xf32>, vector<4x128xf32> -> vector<4x128xf32>
    %193 = arith.addf %192, %188 : vector<4x128xf32>
    %194 = vector.extract_strided_slice %193 {offsets = [0, 0], sizes = [4, 32], strides = [1, 1]} : vector<4x128xf32> to vector<4x32xf32>
    %195 = arith.negf %194 : vector<4x32xf32>
    %196 = math.exp %195 : vector<4x32xf32>
    %cst_30 = arith.constant 1.000000e+00 : f32
    %197 = vector.broadcast %cst_30 : f32 to vector<4x32xf32>
    %198 = arith.addf %197, %196 : vector<4x32xf32>
    %199 = arith.divf %197, %198 : vector<4x32xf32>
    %200 = vector.extract_strided_slice %193 {offsets = [0, 32], sizes = [4, 32], strides = [1, 1]} : vector<4x128xf32> to vector<4x32xf32>
    %201 = arith.negf %200 : vector<4x32xf32>
    %202 = math.exp %201 : vector<4x32xf32>
    %cst_31 = arith.constant 1.000000e+00 : f32
    %203 = vector.broadcast %cst_31 : f32 to vector<4x32xf32>
    %204 = arith.addf %203, %202 : vector<4x32xf32>
    %205 = arith.divf %203, %204 : vector<4x32xf32>
    %206 = vector.extract_strided_slice %193 {offsets = [0, 64], sizes = [4, 32], strides = [1, 1]} : vector<4x128xf32> to vector<4x32xf32>
    %207 = math.tanh %206 : vector<4x32xf32>
    %208 = vector.extract_strided_slice %193 {offsets = [0, 96], sizes = [4, 32], strides = [1, 1]} : vector<4x128xf32> to vector<4x32xf32>
    %209 = arith.negf %208 : vector<4x32xf32>
    %210 = math.exp %209 : vector<4x32xf32>
    %cst_32 = arith.constant 1.000000e+00 : f32
    %211 = vector.broadcast %cst_32 : f32 to vector<4x32xf32>
    %212 = arith.addf %211, %210 : vector<4x32xf32>
    %213 = arith.divf %211, %212 : vector<4x32xf32>
    %214 = arith.mulf %205, %181 : vector<4x32xf32>
    %215 = arith.mulf %199, %207 : vector<4x32xf32>
    %216 = arith.addf %214, %215 : vector<4x32xf32>
    %217 = math.tanh %216 : vector<4x32xf32>
    %218 = arith.mulf %213, %217 : vector<4x32xf32>
    %219 = vector.extract_strided_slice %218 {offsets = [0, 0], sizes = [2, 32], strides = [1, 1]} : vector<4x32xf32> to vector<2x32xf32>
    %220 = vector.extract_strided_slice %218 {offsets = [2, 0], sizes = [2, 32], strides = [1, 1]} : vector<4x32xf32> to vector<2x32xf32>
    %221 = vector.extract_strided_slice %6 {offsets = [12, 0], sizes = [2, 128], strides = [1, 1]} : vector<16x128xf32> to vector<2x128xf32>
    %222 = vector.extract_strided_slice %7 {offsets = [2, 0], sizes = [2, 128], strides = [1, 1]} : vector<16x128xf32> to vector<2x128xf32>
    %223 = tpu.concatenate %221, %222 in 0 : vector<2x128xf32>, vector<2x128xf32> -> vector<4x128xf32>
    %224 = tpu.concatenate %219, %9 in 1 : vector<2x32xf32>, vector<2x32xf32> -> vector<2x64xf32>
    %225 = tpu.concatenate %9, %220 in 1 : vector<2x32xf32>, vector<2x32xf32> -> vector<2x64xf32>
    %226 = tpu.concatenate %224, %225 in 0 : vector<2x64xf32>, vector<2x64xf32> -> vector<4x64xf32>
    %cst_33 = arith.constant dense<0.000000e+00> : vector<4x128xf32>
    %227 = tpu.matmul %226, %8, %cst_33 {dimension_numbers = #tpu.dot_dimension_numbers<[1], [0], [0], [1], [0, 0, 1, 1], [], []>} : vector<4x64xf32>, vector<64x128xf32>, vector<4x128xf32> -> vector<4x128xf32>
    %228 = arith.addf %227, %223 : vector<4x128xf32>
    %229 = vector.extract_strided_slice %228 {offsets = [0, 0], sizes = [4, 32], strides = [1, 1]} : vector<4x128xf32> to vector<4x32xf32>
    %230 = arith.negf %229 : vector<4x32xf32>
    %231 = math.exp %230 : vector<4x32xf32>
    %cst_34 = arith.constant 1.000000e+00 : f32
    %232 = vector.broadcast %cst_34 : f32 to vector<4x32xf32>
    %233 = arith.addf %232, %231 : vector<4x32xf32>
    %234 = arith.divf %232, %233 : vector<4x32xf32>
    %235 = vector.extract_strided_slice %228 {offsets = [0, 32], sizes = [4, 32], strides = [1, 1]} : vector<4x128xf32> to vector<4x32xf32>
    %236 = arith.negf %235 : vector<4x32xf32>
    %237 = math.exp %236 : vector<4x32xf32>
    %cst_35 = arith.constant 1.000000e+00 : f32
    %238 = vector.broadcast %cst_35 : f32 to vector<4x32xf32>
    %239 = arith.addf %238, %237 : vector<4x32xf32>
    %240 = arith.divf %238, %239 : vector<4x32xf32>
    %241 = vector.extract_strided_slice %228 {offsets = [0, 64], sizes = [4, 32], strides = [1, 1]} : vector<4x128xf32> to vector<4x32xf32>
    %242 = math.tanh %241 : vector<4x32xf32>
    %243 = vector.extract_strided_slice %228 {offsets = [0, 96], sizes = [4, 32], strides = [1, 1]} : vector<4x128xf32> to vector<4x32xf32>
    %244 = arith.negf %243 : vector<4x32xf32>
    %245 = math.exp %244 : vector<4x32xf32>
    %cst_36 = arith.constant 1.000000e+00 : f32
    %246 = vector.broadcast %cst_36 : f32 to vector<4x32xf32>
    %247 = arith.addf %246, %245 : vector<4x32xf32>
    %248 = arith.divf %246, %247 : vector<4x32xf32>
    %249 = arith.mulf %240, %216 : vector<4x32xf32>
    %250 = arith.mulf %234, %242 : vector<4x32xf32>
    %251 = arith.addf %249, %250 : vector<4x32xf32>
    %252 = math.tanh %251 : vector<4x32xf32>
    %253 = arith.mulf %248, %252 : vector<4x32xf32>
    %254 = vector.extract_strided_slice %253 {offsets = [0, 0], sizes = [2, 32], strides = [1, 1]} : vector<4x32xf32> to vector<2x32xf32>
    %255 = vector.extract_strided_slice %253 {offsets = [2, 0], sizes = [2, 32], strides = [1, 1]} : vector<4x32xf32> to vector<2x32xf32>
    %256 = vector.extract_strided_slice %6 {offsets = [14, 0], sizes = [2, 128], strides = [1, 1]} : vector<16x128xf32> to vector<2x128xf32>
    %257 = vector.extract_strided_slice %7 {offsets = [0, 0], sizes = [2, 128], strides = [1, 1]} : vector<16x128xf32> to vector<2x128xf32>
    %258 = tpu.concatenate %256, %257 in 0 : vector<2x128xf32>, vector<2x128xf32> -> vector<4x128xf32>
    %259 = tpu.concatenate %254, %9 in 1 : vector<2x32xf32>, vector<2x32xf32> -> vector<2x64xf32>
    %260 = tpu.concatenate %9, %255 in 1 : vector<2x32xf32>, vector<2x32xf32> -> vector<2x64xf32>
    %261 = tpu.concatenate %259, %260 in 0 : vector<2x64xf32>, vector<2x64xf32> -> vector<4x64xf32>
    %cst_37 = arith.constant dense<0.000000e+00> : vector<4x128xf32>
    %262 = tpu.matmul %261, %8, %cst_37 {dimension_numbers = #tpu.dot_dimension_numbers<[1], [0], [0], [1], [0, 0, 1, 1], [], []>} : vector<4x64xf32>, vector<64x128xf32>, vector<4x128xf32> -> vector<4x128xf32>
    %263 = arith.addf %262, %258 : vector<4x128xf32>
    %264 = vector.extract_strided_slice %263 {offsets = [0, 0], sizes = [4, 32], strides = [1, 1]} : vector<4x128xf32> to vector<4x32xf32>
    %265 = arith.negf %264 : vector<4x32xf32>
    %266 = math.exp %265 : vector<4x32xf32>
    %cst_38 = arith.constant 1.000000e+00 : f32
    %267 = vector.broadcast %cst_38 : f32 to vector<4x32xf32>
    %268 = arith.addf %267, %266 : vector<4x32xf32>
    %269 = arith.divf %267, %268 : vector<4x32xf32>
    %270 = vector.extract_strided_slice %263 {offsets = [0, 32], sizes = [4, 32], strides = [1, 1]} : vector<4x128xf32> to vector<4x32xf32>
    %271 = arith.negf %270 : vector<4x32xf32>
    %272 = math.exp %271 : vector<4x32xf32>
    %cst_39 = arith.constant 1.000000e+00 : f32
    %273 = vector.broadcast %cst_39 : f32 to vector<4x32xf32>
    %274 = arith.addf %273, %272 : vector<4x32xf32>
    %275 = arith.divf %273, %274 : vector<4x32xf32>
    %276 = vector.extract_strided_slice %263 {offsets = [0, 64], sizes = [4, 32], strides = [1, 1]} : vector<4x128xf32> to vector<4x32xf32>
    %277 = math.tanh %276 : vector<4x32xf32>
    %278 = vector.extract_strided_slice %263 {offsets = [0, 96], sizes = [4, 32], strides = [1, 1]} : vector<4x128xf32> to vector<4x32xf32>
    %279 = arith.negf %278 : vector<4x32xf32>
    %280 = math.exp %279 : vector<4x32xf32>
    %cst_40 = arith.constant 1.000000e+00 : f32
    %281 = vector.broadcast %cst_40 : f32 to vector<4x32xf32>
    %282 = arith.addf %281, %280 : vector<4x32xf32>
    %283 = arith.divf %281, %282 : vector<4x32xf32>
    %284 = arith.mulf %275, %251 : vector<4x32xf32>
    %285 = arith.mulf %269, %277 : vector<4x32xf32>
    %286 = arith.addf %284, %285 : vector<4x32xf32>
    %287 = math.tanh %286 : vector<4x32xf32>
    %288 = arith.mulf %283, %287 : vector<4x32xf32>
    %289 = vector.extract_strided_slice %288 {offsets = [0, 0], sizes = [2, 32], strides = [1, 1]} : vector<4x32xf32> to vector<2x32xf32>
    %290 = vector.extract_strided_slice %288 {offsets = [2, 0], sizes = [2, 32], strides = [1, 1]} : vector<4x32xf32> to vector<2x32xf32>
    %291 = tpu.concatenate %44, %290 in 1 : vector<2x32xf32>, vector<2x32xf32> -> vector<2x64xf32>
    %292 = tpu.concatenate %79, %255 in 1 : vector<2x32xf32>, vector<2x32xf32> -> vector<2x64xf32>
    %293 = tpu.concatenate %114, %220 in 1 : vector<2x32xf32>, vector<2x32xf32> -> vector<2x64xf32>
    %294 = tpu.concatenate %149, %185 in 1 : vector<2x32xf32>, vector<2x32xf32> -> vector<2x64xf32>
    %295 = tpu.concatenate %184, %150 in 1 : vector<2x32xf32>, vector<2x32xf32> -> vector<2x64xf32>
    %296 = tpu.concatenate %219, %115 in 1 : vector<2x32xf32>, vector<2x32xf32> -> vector<2x64xf32>
    %297 = tpu.concatenate %254, %80 in 1 : vector<2x32xf32>, vector<2x32xf32> -> vector<2x64xf32>
    %298 = tpu.concatenate %289, %45 in 1 : vector<2x32xf32>, vector<2x32xf32> -> vector<2x64xf32>
    %299 = tpu.concatenate %291, %292, %293, %294, %295, %296, %297, %298 in 0 : vector<2x64xf32>, vector<2x64xf32>, vector<2x64xf32>, vector<2x64xf32>, vector<2x64xf32>, vector<2x64xf32>, vector<2x64xf32>, vector<2x64xf32> -> vector<16x64xf32>
    %c0_41 = arith.constant 0 : index
    %c0_42 = arith.constant 0 : index
    %300 = vector.load %arg4[%c0_41, %c0_42] : memref<64x128xf32, #tpu.memory_space<vmem>>, vector<64x128xf32>
    %cst_43 = arith.constant dense<0.000000e+00> : vector<16x128xf32>
    %301 = tpu.matmul %299, %300, %cst_43 {dimension_numbers = #tpu.dot_dimension_numbers<[1], [0], [0], [1], [0, 0, 1, 1], [], []>} : vector<16x64xf32>, vector<64x128xf32>, vector<16x128xf32> -> vector<16x128xf32>
    %c0_44 = arith.constant 0 : index
    %c0_45 = arith.constant 0 : index
    %302 = vector.load %arg5[%c0_44, %c0_45] : memref<1x128xf32, #tpu.memory_space<vmem>>, vector<1x128xf32>
    %303 = vector.broadcast %302 : vector<1x128xf32> to vector<16x128xf32>
    %304 = arith.addf %301, %303 : vector<16x128xf32>
    %c0_46 = arith.constant 0 : index
    %c0_47 = arith.constant 0 : index
    %305 = vector.load %arg6[%c0_46, %c0_47] : memref<32x128xf32, #tpu.memory_space<vmem>>, vector<32x128xf32>
    %cst_48 = arith.constant dense<0.000000e+00> : vector<2x128xf32>
    %306 = tpu.matmul %9, %305, %cst_48 {dimension_numbers = #tpu.dot_dimension_numbers<[1], [0], [0], [1], [0, 0, 1, 1], [], []>} : vector<2x32xf32>, vector<32x128xf32>, vector<2x128xf32> -> vector<2x128xf32>
    %307 = vector.extract_strided_slice %304 {offsets = [0, 0], sizes = [2, 128], strides = [1, 1]} : vector<16x128xf32> to vector<2x128xf32>
    %308 = arith.addf %306, %307 : vector<2x128xf32>
    %309 = vector.extract_strided_slice %308 {offsets = [0, 0], sizes = [2, 32], strides = [1, 1]} : vector<2x128xf32> to vector<2x32xf32>
    %310 = arith.negf %309 : vector<2x32xf32>
    %311 = math.exp %310 : vector<2x32xf32>
    %cst_49 = arith.constant 1.000000e+00 : f32
    %312 = vector.broadcast %cst_49 : f32 to vector<2x32xf32>
    %313 = arith.addf %312, %311 : vector<2x32xf32>
    %314 = arith.divf %312, %313 : vector<2x32xf32>
    %315 = vector.extract_strided_slice %308 {offsets = [0, 32], sizes = [2, 32], strides = [1, 1]} : vector<2x128xf32> to vector<2x32xf32>
    %316 = arith.negf %315 : vector<2x32xf32>
    %317 = math.exp %316 : vector<2x32xf32>
    %cst_50 = arith.constant 1.000000e+00 : f32
    %318 = vector.broadcast %cst_50 : f32 to vector<2x32xf32>
    %319 = arith.addf %318, %317 : vector<2x32xf32>
    %320 = arith.divf %318, %319 : vector<2x32xf32>
    %321 = vector.extract_strided_slice %308 {offsets = [0, 64], sizes = [2, 32], strides = [1, 1]} : vector<2x128xf32> to vector<2x32xf32>
    %322 = math.tanh %321 : vector<2x32xf32>
    %323 = vector.extract_strided_slice %308 {offsets = [0, 96], sizes = [2, 32], strides = [1, 1]} : vector<2x128xf32> to vector<2x32xf32>
    %324 = arith.negf %323 : vector<2x32xf32>
    %325 = math.exp %324 : vector<2x32xf32>
    %cst_51 = arith.constant 1.000000e+00 : f32
    %326 = vector.broadcast %cst_51 : f32 to vector<2x32xf32>
    %327 = arith.addf %326, %325 : vector<2x32xf32>
    %328 = arith.divf %326, %327 : vector<2x32xf32>
    %329 = arith.mulf %320, %9 : vector<2x32xf32>
    %330 = arith.mulf %314, %322 : vector<2x32xf32>
    %331 = arith.addf %329, %330 : vector<2x32xf32>
    %332 = math.tanh %331 : vector<2x32xf32>
    %333 = arith.mulf %328, %332 : vector<2x32xf32>
    %cst_52 = arith.constant dense<0.000000e+00> : vector<2x128xf32>
    %334 = tpu.matmul %333, %305, %cst_52 {dimension_numbers = #tpu.dot_dimension_numbers<[1], [0], [0], [1], [0, 0, 1, 1], [], []>} : vector<2x32xf32>, vector<32x128xf32>, vector<2x128xf32> -> vector<2x128xf32>
    %335 = vector.extract_strided_slice %304 {offsets = [2, 0], sizes = [2, 128], strides = [1, 1]} : vector<16x128xf32> to vector<2x128xf32>
    %336 = arith.addf %334, %335 : vector<2x128xf32>
    %337 = vector.extract_strided_slice %336 {offsets = [0, 0], sizes = [2, 32], strides = [1, 1]} : vector<2x128xf32> to vector<2x32xf32>
    %338 = arith.negf %337 : vector<2x32xf32>
    %339 = math.exp %338 : vector<2x32xf32>
    %cst_53 = arith.constant 1.000000e+00 : f32
    %340 = vector.broadcast %cst_53 : f32 to vector<2x32xf32>
    %341 = arith.addf %340, %339 : vector<2x32xf32>
    %342 = arith.divf %340, %341 : vector<2x32xf32>
    %343 = vector.extract_strided_slice %336 {offsets = [0, 32], sizes = [2, 32], strides = [1, 1]} : vector<2x128xf32> to vector<2x32xf32>
    %344 = arith.negf %343 : vector<2x32xf32>
    %345 = math.exp %344 : vector<2x32xf32>
    %cst_54 = arith.constant 1.000000e+00 : f32
    %346 = vector.broadcast %cst_54 : f32 to vector<2x32xf32>
    %347 = arith.addf %346, %345 : vector<2x32xf32>
    %348 = arith.divf %346, %347 : vector<2x32xf32>
    %349 = vector.extract_strided_slice %336 {offsets = [0, 64], sizes = [2, 32], strides = [1, 1]} : vector<2x128xf32> to vector<2x32xf32>
    %350 = math.tanh %349 : vector<2x32xf32>
    %351 = vector.extract_strided_slice %336 {offsets = [0, 96], sizes = [2, 32], strides = [1, 1]} : vector<2x128xf32> to vector<2x32xf32>
    %352 = arith.negf %351 : vector<2x32xf32>
    %353 = math.exp %352 : vector<2x32xf32>
    %cst_55 = arith.constant 1.000000e+00 : f32
    %354 = vector.broadcast %cst_55 : f32 to vector<2x32xf32>
    %355 = arith.addf %354, %353 : vector<2x32xf32>
    %356 = arith.divf %354, %355 : vector<2x32xf32>
    %357 = arith.mulf %348, %331 : vector<2x32xf32>
    %358 = arith.mulf %342, %350 : vector<2x32xf32>
    %359 = arith.addf %357, %358 : vector<2x32xf32>
    %360 = math.tanh %359 : vector<2x32xf32>
    %361 = arith.mulf %356, %360 : vector<2x32xf32>
    %cst_56 = arith.constant dense<0.000000e+00> : vector<2x128xf32>
    %362 = tpu.matmul %361, %305, %cst_56 {dimension_numbers = #tpu.dot_dimension_numbers<[1], [0], [0], [1], [0, 0, 1, 1], [], []>} : vector<2x32xf32>, vector<32x128xf32>, vector<2x128xf32> -> vector<2x128xf32>
    %363 = vector.extract_strided_slice %304 {offsets = [4, 0], sizes = [2, 128], strides = [1, 1]} : vector<16x128xf32> to vector<2x128xf32>
    %364 = arith.addf %362, %363 : vector<2x128xf32>
    %365 = vector.extract_strided_slice %364 {offsets = [0, 0], sizes = [2, 32], strides = [1, 1]} : vector<2x128xf32> to vector<2x32xf32>
    %366 = arith.negf %365 : vector<2x32xf32>
    %367 = math.exp %366 : vector<2x32xf32>
    %cst_57 = arith.constant 1.000000e+00 : f32
    %368 = vector.broadcast %cst_57 : f32 to vector<2x32xf32>
    %369 = arith.addf %368, %367 : vector<2x32xf32>
    %370 = arith.divf %368, %369 : vector<2x32xf32>
    %371 = vector.extract_strided_slice %364 {offsets = [0, 32], sizes = [2, 32], strides = [1, 1]} : vector<2x128xf32> to vector<2x32xf32>
    %372 = arith.negf %371 : vector<2x32xf32>
    %373 = math.exp %372 : vector<2x32xf32>
    %cst_58 = arith.constant 1.000000e+00 : f32
    %374 = vector.broadcast %cst_58 : f32 to vector<2x32xf32>
    %375 = arith.addf %374, %373 : vector<2x32xf32>
    %376 = arith.divf %374, %375 : vector<2x32xf32>
    %377 = vector.extract_strided_slice %364 {offsets = [0, 64], sizes = [2, 32], strides = [1, 1]} : vector<2x128xf32> to vector<2x32xf32>
    %378 = math.tanh %377 : vector<2x32xf32>
    %379 = vector.extract_strided_slice %364 {offsets = [0, 96], sizes = [2, 32], strides = [1, 1]} : vector<2x128xf32> to vector<2x32xf32>
    %380 = arith.negf %379 : vector<2x32xf32>
    %381 = math.exp %380 : vector<2x32xf32>
    %cst_59 = arith.constant 1.000000e+00 : f32
    %382 = vector.broadcast %cst_59 : f32 to vector<2x32xf32>
    %383 = arith.addf %382, %381 : vector<2x32xf32>
    %384 = arith.divf %382, %383 : vector<2x32xf32>
    %385 = arith.mulf %376, %359 : vector<2x32xf32>
    %386 = arith.mulf %370, %378 : vector<2x32xf32>
    %387 = arith.addf %385, %386 : vector<2x32xf32>
    %388 = math.tanh %387 : vector<2x32xf32>
    %389 = arith.mulf %384, %388 : vector<2x32xf32>
    %cst_60 = arith.constant dense<0.000000e+00> : vector<2x128xf32>
    %390 = tpu.matmul %389, %305, %cst_60 {dimension_numbers = #tpu.dot_dimension_numbers<[1], [0], [0], [1], [0, 0, 1, 1], [], []>} : vector<2x32xf32>, vector<32x128xf32>, vector<2x128xf32> -> vector<2x128xf32>
    %391 = vector.extract_strided_slice %304 {offsets = [6, 0], sizes = [2, 128], strides = [1, 1]} : vector<16x128xf32> to vector<2x128xf32>
    %392 = arith.addf %390, %391 : vector<2x128xf32>
    %393 = vector.extract_strided_slice %392 {offsets = [0, 0], sizes = [2, 32], strides = [1, 1]} : vector<2x128xf32> to vector<2x32xf32>
    %394 = arith.negf %393 : vector<2x32xf32>
    %395 = math.exp %394 : vector<2x32xf32>
    %cst_61 = arith.constant 1.000000e+00 : f32
    %396 = vector.broadcast %cst_61 : f32 to vector<2x32xf32>
    %397 = arith.addf %396, %395 : vector<2x32xf32>
    %398 = arith.divf %396, %397 : vector<2x32xf32>
    %399 = vector.extract_strided_slice %392 {offsets = [0, 32], sizes = [2, 32], strides = [1, 1]} : vector<2x128xf32> to vector<2x32xf32>
    %400 = arith.negf %399 : vector<2x32xf32>
    %401 = math.exp %400 : vector<2x32xf32>
    %cst_62 = arith.constant 1.000000e+00 : f32
    %402 = vector.broadcast %cst_62 : f32 to vector<2x32xf32>
    %403 = arith.addf %402, %401 : vector<2x32xf32>
    %404 = arith.divf %402, %403 : vector<2x32xf32>
    %405 = vector.extract_strided_slice %392 {offsets = [0, 64], sizes = [2, 32], strides = [1, 1]} : vector<2x128xf32> to vector<2x32xf32>
    %406 = math.tanh %405 : vector<2x32xf32>
    %407 = vector.extract_strided_slice %392 {offsets = [0, 96], sizes = [2, 32], strides = [1, 1]} : vector<2x128xf32> to vector<2x32xf32>
    %408 = arith.negf %407 : vector<2x32xf32>
    %409 = math.exp %408 : vector<2x32xf32>
    %cst_63 = arith.constant 1.000000e+00 : f32
    %410 = vector.broadcast %cst_63 : f32 to vector<2x32xf32>
    %411 = arith.addf %410, %409 : vector<2x32xf32>
    %412 = arith.divf %410, %411 : vector<2x32xf32>
    %413 = arith.mulf %404, %387 : vector<2x32xf32>
    %414 = arith.mulf %398, %406 : vector<2x32xf32>
    %415 = arith.addf %413, %414 : vector<2x32xf32>
    %416 = math.tanh %415 : vector<2x32xf32>
    %417 = arith.mulf %412, %416 : vector<2x32xf32>
    %cst_64 = arith.constant dense<0.000000e+00> : vector<2x128xf32>
    %418 = tpu.matmul %417, %305, %cst_64 {dimension_numbers = #tpu.dot_dimension_numbers<[1], [0], [0], [1], [0, 0, 1, 1], [], []>} : vector<2x32xf32>, vector<32x128xf32>, vector<2x128xf32> -> vector<2x128xf32>
    %419 = vector.extract_strided_slice %304 {offsets = [8, 0], sizes = [2, 128], strides = [1, 1]} : vector<16x128xf32> to vector<2x128xf32>
    %420 = arith.addf %418, %419 : vector<2x128xf32>
    %421 = vector.extract_strided_slice %420 {offsets = [0, 0], sizes = [2, 32], strides = [1, 1]} : vector<2x128xf32> to vector<2x32xf32>
    %422 = arith.negf %421 : vector<2x32xf32>
    %423 = math.exp %422 : vector<2x32xf32>
    %cst_65 = arith.constant 1.000000e+00 : f32
    %424 = vector.broadcast %cst_65 : f32 to vector<2x32xf32>
    %425 = arith.addf %424, %423 : vector<2x32xf32>
    %426 = arith.divf %424, %425 : vector<2x32xf32>
    %427 = vector.extract_strided_slice %420 {offsets = [0, 32], sizes = [2, 32], strides = [1, 1]} : vector<2x128xf32> to vector<2x32xf32>
    %428 = arith.negf %427 : vector<2x32xf32>
    %429 = math.exp %428 : vector<2x32xf32>
    %cst_66 = arith.constant 1.000000e+00 : f32
    %430 = vector.broadcast %cst_66 : f32 to vector<2x32xf32>
    %431 = arith.addf %430, %429 : vector<2x32xf32>
    %432 = arith.divf %430, %431 : vector<2x32xf32>
    %433 = vector.extract_strided_slice %420 {offsets = [0, 64], sizes = [2, 32], strides = [1, 1]} : vector<2x128xf32> to vector<2x32xf32>
    %434 = math.tanh %433 : vector<2x32xf32>
    %435 = vector.extract_strided_slice %420 {offsets = [0, 96], sizes = [2, 32], strides = [1, 1]} : vector<2x128xf32> to vector<2x32xf32>
    %436 = arith.negf %435 : vector<2x32xf32>
    %437 = math.exp %436 : vector<2x32xf32>
    %cst_67 = arith.constant 1.000000e+00 : f32
    %438 = vector.broadcast %cst_67 : f32 to vector<2x32xf32>
    %439 = arith.addf %438, %437 : vector<2x32xf32>
    %440 = arith.divf %438, %439 : vector<2x32xf32>
    %441 = arith.mulf %432, %415 : vector<2x32xf32>
    %442 = arith.mulf %426, %434 : vector<2x32xf32>
    %443 = arith.addf %441, %442 : vector<2x32xf32>
    %444 = math.tanh %443 : vector<2x32xf32>
    %445 = arith.mulf %440, %444 : vector<2x32xf32>
    %cst_68 = arith.constant dense<0.000000e+00> : vector<2x128xf32>
    %446 = tpu.matmul %445, %305, %cst_68 {dimension_numbers = #tpu.dot_dimension_numbers<[1], [0], [0], [1], [0, 0, 1, 1], [], []>} : vector<2x32xf32>, vector<32x128xf32>, vector<2x128xf32> -> vector<2x128xf32>
    %447 = vector.extract_strided_slice %304 {offsets = [10, 0], sizes = [2, 128], strides = [1, 1]} : vector<16x128xf32> to vector<2x128xf32>
    %448 = arith.addf %446, %447 : vector<2x128xf32>
    %449 = vector.extract_strided_slice %448 {offsets = [0, 0], sizes = [2, 32], strides = [1, 1]} : vector<2x128xf32> to vector<2x32xf32>
    %450 = arith.negf %449 : vector<2x32xf32>
    %451 = math.exp %450 : vector<2x32xf32>
    %cst_69 = arith.constant 1.000000e+00 : f32
    %452 = vector.broadcast %cst_69 : f32 to vector<2x32xf32>
    %453 = arith.addf %452, %451 : vector<2x32xf32>
    %454 = arith.divf %452, %453 : vector<2x32xf32>
    %455 = vector.extract_strided_slice %448 {offsets = [0, 32], sizes = [2, 32], strides = [1, 1]} : vector<2x128xf32> to vector<2x32xf32>
    %456 = arith.negf %455 : vector<2x32xf32>
    %457 = math.exp %456 : vector<2x32xf32>
    %cst_70 = arith.constant 1.000000e+00 : f32
    %458 = vector.broadcast %cst_70 : f32 to vector<2x32xf32>
    %459 = arith.addf %458, %457 : vector<2x32xf32>
    %460 = arith.divf %458, %459 : vector<2x32xf32>
    %461 = vector.extract_strided_slice %448 {offsets = [0, 64], sizes = [2, 32], strides = [1, 1]} : vector<2x128xf32> to vector<2x32xf32>
    %462 = math.tanh %461 : vector<2x32xf32>
    %463 = vector.extract_strided_slice %448 {offsets = [0, 96], sizes = [2, 32], strides = [1, 1]} : vector<2x128xf32> to vector<2x32xf32>
    %464 = arith.negf %463 : vector<2x32xf32>
    %465 = math.exp %464 : vector<2x32xf32>
    %cst_71 = arith.constant 1.000000e+00 : f32
    %466 = vector.broadcast %cst_71 : f32 to vector<2x32xf32>
    %467 = arith.addf %466, %465 : vector<2x32xf32>
    %468 = arith.divf %466, %467 : vector<2x32xf32>
    %469 = arith.mulf %460, %443 : vector<2x32xf32>
    %470 = arith.mulf %454, %462 : vector<2x32xf32>
    %471 = arith.addf %469, %470 : vector<2x32xf32>
    %472 = math.tanh %471 : vector<2x32xf32>
    %473 = arith.mulf %468, %472 : vector<2x32xf32>
    %cst_72 = arith.constant dense<0.000000e+00> : vector<2x128xf32>
    %474 = tpu.matmul %473, %305, %cst_72 {dimension_numbers = #tpu.dot_dimension_numbers<[1], [0], [0], [1], [0, 0, 1, 1], [], []>} : vector<2x32xf32>, vector<32x128xf32>, vector<2x128xf32> -> vector<2x128xf32>
    %475 = vector.extract_strided_slice %304 {offsets = [12, 0], sizes = [2, 128], strides = [1, 1]} : vector<16x128xf32> to vector<2x128xf32>
    %476 = arith.addf %474, %475 : vector<2x128xf32>
    %477 = vector.extract_strided_slice %476 {offsets = [0, 0], sizes = [2, 32], strides = [1, 1]} : vector<2x128xf32> to vector<2x32xf32>
    %478 = arith.negf %477 : vector<2x32xf32>
    %479 = math.exp %478 : vector<2x32xf32>
    %cst_73 = arith.constant 1.000000e+00 : f32
    %480 = vector.broadcast %cst_73 : f32 to vector<2x32xf32>
    %481 = arith.addf %480, %479 : vector<2x32xf32>
    %482 = arith.divf %480, %481 : vector<2x32xf32>
    %483 = vector.extract_strided_slice %476 {offsets = [0, 32], sizes = [2, 32], strides = [1, 1]} : vector<2x128xf32> to vector<2x32xf32>
    %484 = arith.negf %483 : vector<2x32xf32>
    %485 = math.exp %484 : vector<2x32xf32>
    %cst_74 = arith.constant 1.000000e+00 : f32
    %486 = vector.broadcast %cst_74 : f32 to vector<2x32xf32>
    %487 = arith.addf %486, %485 : vector<2x32xf32>
    %488 = arith.divf %486, %487 : vector<2x32xf32>
    %489 = vector.extract_strided_slice %476 {offsets = [0, 64], sizes = [2, 32], strides = [1, 1]} : vector<2x128xf32> to vector<2x32xf32>
    %490 = math.tanh %489 : vector<2x32xf32>
    %491 = vector.extract_strided_slice %476 {offsets = [0, 96], sizes = [2, 32], strides = [1, 1]} : vector<2x128xf32> to vector<2x32xf32>
    %492 = arith.negf %491 : vector<2x32xf32>
    %493 = math.exp %492 : vector<2x32xf32>
    %cst_75 = arith.constant 1.000000e+00 : f32
    %494 = vector.broadcast %cst_75 : f32 to vector<2x32xf32>
    %495 = arith.addf %494, %493 : vector<2x32xf32>
    %496 = arith.divf %494, %495 : vector<2x32xf32>
    %497 = arith.mulf %488, %471 : vector<2x32xf32>
    %498 = arith.mulf %482, %490 : vector<2x32xf32>
    %499 = arith.addf %497, %498 : vector<2x32xf32>
    %500 = math.tanh %499 : vector<2x32xf32>
    %501 = arith.mulf %496, %500 : vector<2x32xf32>
    %cst_76 = arith.constant dense<0.000000e+00> : vector<2x128xf32>
    %502 = tpu.matmul %501, %305, %cst_76 {dimension_numbers = #tpu.dot_dimension_numbers<[1], [0], [0], [1], [0, 0, 1, 1], [], []>} : vector<2x32xf32>, vector<32x128xf32>, vector<2x128xf32> -> vector<2x128xf32>
    %503 = vector.extract_strided_slice %304 {offsets = [14, 0], sizes = [2, 128], strides = [1, 1]} : vector<16x128xf32> to vector<2x128xf32>
    %504 = arith.addf %502, %503 : vector<2x128xf32>
    %505 = vector.extract_strided_slice %504 {offsets = [0, 0], sizes = [2, 32], strides = [1, 1]} : vector<2x128xf32> to vector<2x32xf32>
    %506 = arith.negf %505 : vector<2x32xf32>
    %507 = math.exp %506 : vector<2x32xf32>
    %cst_77 = arith.constant 1.000000e+00 : f32
    %508 = vector.broadcast %cst_77 : f32 to vector<2x32xf32>
    %509 = arith.addf %508, %507 : vector<2x32xf32>
    %510 = arith.divf %508, %509 : vector<2x32xf32>
    %511 = vector.extract_strided_slice %504 {offsets = [0, 32], sizes = [2, 32], strides = [1, 1]} : vector<2x128xf32> to vector<2x32xf32>
    %512 = arith.negf %511 : vector<2x32xf32>
    %513 = math.exp %512 : vector<2x32xf32>
    %cst_78 = arith.constant 1.000000e+00 : f32
    %514 = vector.broadcast %cst_78 : f32 to vector<2x32xf32>
    %515 = arith.addf %514, %513 : vector<2x32xf32>
    %516 = arith.divf %514, %515 : vector<2x32xf32>
    %517 = vector.extract_strided_slice %504 {offsets = [0, 64], sizes = [2, 32], strides = [1, 1]} : vector<2x128xf32> to vector<2x32xf32>
    %518 = math.tanh %517 : vector<2x32xf32>
    %519 = vector.extract_strided_slice %504 {offsets = [0, 96], sizes = [2, 32], strides = [1, 1]} : vector<2x128xf32> to vector<2x32xf32>
    %520 = arith.negf %519 : vector<2x32xf32>
    %521 = math.exp %520 : vector<2x32xf32>
    %cst_79 = arith.constant 1.000000e+00 : f32
    %522 = vector.broadcast %cst_79 : f32 to vector<2x32xf32>
    %523 = arith.addf %522, %521 : vector<2x32xf32>
    %524 = arith.divf %522, %523 : vector<2x32xf32>
    %525 = arith.mulf %516, %499 : vector<2x32xf32>
    %526 = arith.mulf %510, %518 : vector<2x32xf32>
    %527 = arith.addf %525, %526 : vector<2x32xf32>
    %528 = math.tanh %527 : vector<2x32xf32>
    %529 = arith.mulf %524, %528 : vector<2x32xf32>
    %530 = vector.extract_strided_slice %299 {offsets = [14, 0], sizes = [2, 64], strides = [1, 1]} : vector<16x64xf32> to vector<2x64xf32>
    %c0_80 = arith.constant 0 : index
    %c0_81 = arith.constant 0 : index
    %531 = vector.load %arg7[%c0_80, %c0_81] : memref<64x128xf32, #tpu.memory_space<vmem>>, vector<64x128xf32>
    %cst_82 = arith.constant dense<0.000000e+00> : vector<2x128xf32>
    %532 = tpu.matmul %530, %531, %cst_82 {dimension_numbers = #tpu.dot_dimension_numbers<[1], [0], [0], [1], [0, 0, 1, 1], [], []>} : vector<2x64xf32>, vector<64x128xf32>, vector<2x128xf32> -> vector<2x128xf32>
    %c0_83 = arith.constant 0 : index
    %c0_84 = arith.constant 0 : index
    %533 = vector.load %arg8[%c0_83, %c0_84] : memref<1x128xf32, #tpu.memory_space<vmem>>, vector<1x128xf32>
    %534 = vector.broadcast %533 : vector<1x128xf32> to vector<2x128xf32>
    %535 = arith.addf %532, %534 : vector<2x128xf32>
    %536 = vector.extract_strided_slice %535 {offsets = [0, 0], sizes = [2, 32], strides = [1, 1]} : vector<2x128xf32> to vector<2x32xf32>
    %537 = arith.negf %536 : vector<2x32xf32>
    %538 = math.exp %537 : vector<2x32xf32>
    %cst_85 = arith.constant 1.000000e+00 : f32
    %539 = vector.broadcast %cst_85 : f32 to vector<2x32xf32>
    %540 = arith.addf %539, %538 : vector<2x32xf32>
    %541 = arith.divf %539, %540 : vector<2x32xf32>
    %542 = vector.extract_strided_slice %535 {offsets = [0, 32], sizes = [2, 32], strides = [1, 1]} : vector<2x128xf32> to vector<2x32xf32>
    %543 = arith.negf %542 : vector<2x32xf32>
    %544 = math.exp %543 : vector<2x32xf32>
    %cst_86 = arith.constant 1.000000e+00 : f32
    %545 = vector.broadcast %cst_86 : f32 to vector<2x32xf32>
    %546 = arith.addf %545, %544 : vector<2x32xf32>
    %547 = arith.divf %545, %546 : vector<2x32xf32>
    %548 = vector.extract_strided_slice %535 {offsets = [0, 64], sizes = [2, 32], strides = [1, 1]} : vector<2x128xf32> to vector<2x32xf32>
    %549 = math.tanh %548 : vector<2x32xf32>
    %550 = vector.extract_strided_slice %535 {offsets = [0, 96], sizes = [2, 32], strides = [1, 1]} : vector<2x128xf32> to vector<2x32xf32>
    %551 = arith.negf %550 : vector<2x32xf32>
    %552 = math.exp %551 : vector<2x32xf32>
    %cst_87 = arith.constant 1.000000e+00 : f32
    %553 = vector.broadcast %cst_87 : f32 to vector<2x32xf32>
    %554 = arith.addf %553, %552 : vector<2x32xf32>
    %555 = arith.divf %553, %554 : vector<2x32xf32>
    %556 = arith.mulf %547, %9 : vector<2x32xf32>
    %557 = arith.mulf %541, %549 : vector<2x32xf32>
    %558 = arith.addf %556, %557 : vector<2x32xf32>
    %559 = math.tanh %558 : vector<2x32xf32>
    %560 = arith.mulf %555, %559 : vector<2x32xf32>
    %561 = tpu.concatenate %529, %560 in 1 : vector<2x32xf32>, vector<2x32xf32> -> vector<2x64xf32>
    %c0_88 = arith.constant 0 : index
    %c0_89 = arith.constant 0 : index
    %562 = vector.load %arg9[%c0_88, %c0_89] : memref<64x32xf32, #tpu.memory_space<vmem>>, vector<64x32xf32>
    %cst_90 = arith.constant dense<0.000000e+00> : vector<2x32xf32>
    %563 = tpu.matmul %561, %562, %cst_90 {dimension_numbers = #tpu.dot_dimension_numbers<[1], [0], [0], [1], [0, 0, 1, 1], [], []>} : vector<2x64xf32>, vector<64x32xf32>, vector<2x32xf32> -> vector<2x32xf32>
    %c0_91 = arith.constant 0 : index
    %c0_92 = arith.constant 0 : index
    %564 = vector.load %arg10[%c0_91, %c0_92] : memref<1x32xf32, #tpu.memory_space<vmem>>, vector<1x32xf32>
    %565 = vector.broadcast %564 : vector<1x32xf32> to vector<2x32xf32>
    %566 = arith.addf %563, %565 : vector<2x32xf32>
    %cst_93 = arith.constant 0.000000e+00 : f32
    %567 = vector.broadcast %cst_93 : f32 to vector<2x32xf32>
    %568 = arith.maximumf %566, %567 : vector<2x32xf32>
    %c0_94 = arith.constant 0 : index
    %c0_95 = arith.constant 0 : index
    %569 = vector.load %arg11[%c0_94, %c0_95] : memref<2x32xf32, #tpu.memory_space<vmem>>, vector<2x32xf32>
    tpu.vector_store %arg11[%c0_94, %c0_95], %568 {strides = array<i32>} : memref<2x32xf32, #tpu.memory_space<vmem>>, vector<2x32xf32>,
    return
  }
}

</mosaic_0001>

<llo_original>
// kernel: tpu_custom_call.1
$region0: #{tpu_custom_call.1}
  #allocation0 [shape = 'u32[]', space=smem, size = 0x4, offset = 0x4, fixed_abs, tag = 'smem constant byte address 0x4 - core index']
  #allocation1 [shape = 'u32[144,128]{1,0:T(1,128)}', space=vmem, size = 0x12000, scoped, tag = 'internal scratch']
  %s0 = inlined_call_operand.hbm [shape: f32[16,16], index: 0, kind: input, shape index: {}]
  %s1 = inlined_call_operand.vmem [shape: f32[16,256], index: 1, kind: input, shape index: {}]
  %s2 = inlined_call_operand.vmem [shape: f32[1,256], index: 2, kind: input, shape index: {}]
  %s3 = inlined_call_operand.vmem [shape: f32[64,128], index: 3, kind: input, shape index: {}]
  %s4 = inlined_call_operand.hbm [shape: f32[64,128], index: 4, kind: input, shape index: {}]
  %s5 = inlined_call_operand.vmem [shape: f32[1,128], index: 5, kind: input, shape index: {}]
  %s6 = inlined_call_operand.hbm [shape: f32[32,128], index: 6, kind: input, shape index: {}]
  %s7 = inlined_call_operand.hbm [shape: f32[64,128], index: 7, kind: input, shape index: {}]
  %s8 = inlined_call_operand.vmem [shape: f32[1,128], index: 8, kind: input, shape index: {}]
  %s9 = inlined_call_operand.vmem [shape: f32[64,32], index: 9, kind: input, shape index: {}]
  %s10 = inlined_call_operand.vmem [shape: f32[1,32], index: 10, kind: input, shape index: {}]
  %s11 = inlined_call_operand.hbm [shape: f32[2,32], index: 11, kind: output, shape index: {}]
  %s12 = sld [smem:[#allocation0]]
  $region70: #{tpu_custom_call.1} parent=0
    _
  %s14 = ssub.s32 1, %s12
  %s15 = scalar_select 0, %s14, %s12
  $region1: #{tpu_custom_call.1} parent=0
    #allocation2 [shape = 'u8[8192]{0}', space=vmem, size = 0x2000, scoped, tag = 'input window, operand 0, single buffered']
    #allocation3 [shape = 's32[1]{0}', space=sflag, size = 0x4, scoped, tag = 'scoped memory for tpu_custom_call.1']
    #allocation4 [shape = 's32[1]{0}', space=sflag, size = 0x4, scoped, tag = 'scoped memory for tpu_custom_call.1']
    #allocation5 [shape = 'u8[32768]{0}', space=vmem, size = 0x8000, scoped, tag = 'input window, operand 4, single buffered']
    #allocation6 [shape = 's32[1]{0}', space=sflag, size = 0x4, scoped, tag = 'scoped memory for tpu_custom_call.1']
    #allocation7 [shape = 'u8[16384]{0}', space=vmem, size = 0x4000, scoped, tag = 'input window, operand 6, single buffered']
    #allocation8 [shape = 'u8[32768]{0}', space=vmem, size = 0x8000, scoped, tag = 'input window, operand 7, single buffered']
    #allocation9 [shape = 's32[1]{0}', space=sflag, size = 0x4, scoped, tag = 'scoped memory for tpu_custom_call.1']
    #allocation10 [shape = 'u8[1024]{0}', space=vmem, size = 0x400, scoped, tag = 'output window, operand 0, single buffered']
    %16 = vsyncpa [#allocation3], 0
    %17 = vsyncpa [#allocation6], 0
    %18 = vsyncpa [#allocation9], 0
    %19 = vsyncpa [#allocation4], 0
    // Predicated region
    $region2: #{tpu_custom_call.1} parent=1 // pred_check
      _
    $region3: #{tpu_custom_call.1} parent=1 // pred_check_branch
      %21 = sbr.rel (0) target = $region5
    $region4: #{tpu_custom_call.1} parent=1 // pred_region
      %s23 = ssub.s32 256, 256
      %24 = vsyncadd [#allocation3], %s23
      %s25 = sshll.u32 [#allocation2], 4
      %s26 = int_to_ptr.vmem [resolvable:$true] %s25
      %31 = dma.hbm_to_vmem [thread:$0]  %s0, 256, %s26, [#allocation3], 128, 128, 8
    $region5: #{tpu_custom_call.1} parent=1 // pred_fallthru
      _
    // Predicated region
    $region6: #{tpu_custom_call.1} parent=1 // pred_check
      _
    $region7: #{tpu_custom_call.1} parent=1 // pred_check_branch
      %33 = sbr.rel (0) target = $region9
    $region8: #{tpu_custom_call.1} parent=1 // pred_region
      _
    $region9: #{tpu_custom_call.1} parent=1 // pred_fallthru
      _
    // Predicated region
    $region10: #{tpu_custom_call.1} parent=1 // pred_check
      _
    $region11: #{tpu_custom_call.1} parent=1 // pred_check_branch
      %35 = sbr.rel (0) target = $region13
    $region12: #{tpu_custom_call.1} parent=1 // pred_region
      _
    $region13: #{tpu_custom_call.1} parent=1 // pred_fallthru
      _
    // Predicated region
    $region14: #{tpu_custom_call.1} parent=1 // pred_check
      _
    $region15: #{tpu_custom_call.1} parent=1 // pred_check_branch
      %37 = sbr.rel (0) target = $region17
    $region16: #{tpu_custom_call.1} parent=1 // pred_region
      _
    $region17: #{tpu_custom_call.1} parent=1 // pred_fallthru
      _
    // Predicated region
    $region18: #{tpu_custom_call.1} parent=1 // pred_check
      _
    $region19: #{tpu_custom_call.1} parent=1 // pred_check_branch
      %39 = sbr.rel (0) target = $region21
    $region20: #{tpu_custom_call.1} parent=1 // pred_region
      %s41 = ssub.s32 1024, 1024
      %42 = vsyncadd [#allocation6], %s41
      %s43 = sshll.u32 [#allocation5], 4
      %s44 = int_to_ptr.vmem [resolvable:$true] %s43
      %49 = dma.hbm_to_vmem [thread:$0]  %s4, 1024, %s44, [#allocation6], 128, 128, 8
    $region21: #{tpu_custom_call.1} parent=1 // pred_fallthru
      _
    // Predicated region
    $region22: #{tpu_custom_call.1} parent=1 // pred_check
      _
    $region23: #{tpu_custom_call.1} parent=1 // pred_check_branch
      %51 = sbr.rel (0) target = $region25
    $region24: #{tpu_custom_call.1} parent=1 // pred_region
      _
    $region25: #{tpu_custom_call.1} parent=1 // pred_fallthru
      _
    // Predicated region
    $region26: #{tpu_custom_call.1} parent=1 // pred_check
      _
    $region27: #{tpu_custom_call.1} parent=1 // pred_check_branch
      %53 = sbr.rel (0) target = $region29
    $region28: #{tpu_custom_call.1} parent=1 // pred_region
      %s55 = ssub.s32 512, 512
      %56 = vsyncadd [#allocation6], %s55
      %s57 = sshll.u32 [#allocation7], 4
      %s58 = int_to_ptr.vmem [resolvable:$true] %s57
      %63 = dma.hbm_to_vmem [thread:$0]  %s6, 512, %s58, [#allocation6], 128, 128, 8
    $region29: #{tpu_custom_call.1} parent=1 // pred_fallthru
      _
    // Predicated region
    $region30: #{tpu_custom_call.1} parent=1 // pred_check
      _
    $region31: #{tpu_custom_call.1} parent=1 // pred_check_branch
      %65 = sbr.rel (0) target = $region33
    $region32: #{tpu_custom_call.1} parent=1 // pred_region
      %s67 = ssub.s32 1024, 1024
      %68 = vsyncadd [#allocation9], %s67
      %s69 = sshll.u32 [#allocation8], 4
      %s70 = int_to_ptr.vmem [resolvable:$true] %s69
      %75 = dma.hbm_to_vmem [thread:$0]  %s7, 1024, %s70, [#allocation9], 128, 128, 8
    $region33: #{tpu_custom_call.1} parent=1 // pred_fallthru
      _
    // Predicated region
    $region34: #{tpu_custom_call.1} parent=1 // pred_check
      _
    $region35: #{tpu_custom_call.1} parent=1 // pred_check_branch
      %77 = sbr.rel (0) target = $region37
    $region36: #{tpu_custom_call.1} parent=1 // pred_region
      _
    $region37: #{tpu_custom_call.1} parent=1 // pred_fallthru
      _
    // Predicated region
    $region38: #{tpu_custom_call.1} parent=1 // pred_check
      _
    $region39: #{tpu_custom_call.1} parent=1 // pred_check_branch
      %79 = sbr.rel (0) target = $region41
    $region40: #{tpu_custom_call.1} parent=1 // pred_region
      _
    $region41: #{tpu_custom_call.1} parent=1 // pred_fallthru
      _
    // Predicated region
    $region42: #{tpu_custom_call.1} parent=1 // pred_check
      _
    $region43: #{tpu_custom_call.1} parent=1 // pred_check_branch
      %81 = sbr.rel (0) target = $region45
    $region44: #{tpu_custom_call.1} parent=1 // pred_region
      _
    $region45: #{tpu_custom_call.1} parent=1 // pred_fallthru
      _
    // Predicated region
    $region46: #{tpu_custom_call.1} parent=1 // pred_check
      _
    $region47: #{tpu_custom_call.1} parent=1 // pred_check_branch
      %83 = sbr.rel (0) target = $region49
    $region48: #{tpu_custom_call.1} parent=1 // pred_region
      %84 = dma.done [#allocation3], 256
    $region49: #{tpu_custom_call.1} parent=1 // pred_fallthru
      _
    // Predicated region
    $region50: #{tpu_custom_call.1} parent=1 // pred_check
      _
    $region51: #{tpu_custom_call.1} parent=1 // pred_check_branch
      %86 = sbr.rel (0) target = $region53
    $region52: #{tpu_custom_call.1} parent=1 // pred_region
      %87 = dma.done [#allocation6], 1024
    $region53: #{tpu_custom_call.1} parent=1 // pred_fallthru
      _
    // Predicated region
    $region54: #{tpu_custom_call.1} parent=1 // pred_check
      _
    $region55: #{tpu_custom_call.1} parent=1 // pred_check_branch
      %89 = sbr.rel (0) target = $region57
    $region56: #{tpu_custom_call.1} parent=1 // pred_region
      %90 = dma.done [#allocation6], 512
    $region57: #{tpu_custom_call.1} parent=1 // pred_fallthru
      _
    // Predicated region
    $region58: #{tpu_custom_call.1} parent=1 // pred_check
      _
    $region59: #{tpu_custom_call.1} parent=1 // pred_check_branch
      %92 = sbr.rel (0) target = $region61
    $region60: #{tpu_custom_call.1} parent=1 // pred_region
      %93 = dma.done [#allocation9], 1024
    $region61: #{tpu_custom_call.1} parent=1 // pred_fallthru
      _
    %v94 = vld [vmem:[#allocation2] sm:$0xff]
    %v95 = vld [vmem:[#allocation2 + $0x8] sm:$0xff]
    %v96 = vld [vmem:[%s1] sm:$0xff]
    %v97 = vld [vmem:[%s1 + $0x8] sm:$0xff]
    %v98 = vld [vmem:[%s1 + $0x10] sm:$0xff]
    %v99 = vld [vmem:[%s1 + $0x18] sm:$0xff]
    %v100 = vld [vmem:[%s2] sm:$0x3]
    %v102 = vlaneseq
    %v103 = vshrl.u32 %v102, 7
    %v104 = vsub.s32 0, %v103
    %v105 = vrot.slane %v100, %v104
    %v106 = vlaneseq
    %v107 = vshrl.u32 %v106, 7
    %v108 = vsub.s32 1, %v107
    %v109 = vrot.slane %v100, %v108
    %vm112 = vcmask 130048
    %v114 = vsel %vm112, %v94, 0
    %v117 = vsel %vm112, %v95, 0
    %119 = vmatprep.subr.mxu0 0.0
    %120 = vmatpush1.msra.mxu0 0.0
    %121 = vmatprep.subr.mxu0 0.0
    %122 = vmatpush1.msra.mxu0 0.0
    %123 = vmatprep.subr.mxu0 0.0
    %124 = vmatpush1.msra.mxu0 0.0
    %125 = vmatprep.subr.mxu0 0.0
    %126 = vmatpush1.msra.mxu0 0.0
    %127 = vmatprep.subr.mxu0 0.0
    %128 = vmatpush1.msra.mxu0 0.0
    %129 = vmatprep.subr.mxu0 0.0
    %130 = vmatpush1.msra.mxu0 0.0
    %131 = vmatprep.subr.mxu0 0.0
    %132 = vmatpush1.msra.mxu0 0.0
    %133 = vmatprep.subr.mxu0 0.0
    %134 = vmatpush1.msra.mxu0 0.0
    %135 = vmatprep.subr.mxu0 0.0
    %136 = vmatpush1.msra.mxu0 0.0
    %137 = vmatprep.subr.mxu0 0.0
    %138 = vmatpush1.msra.mxu0 0.0
    %139 = vmatprep.subr.mxu0 0.0
    %140 = vmatpush1.msra.mxu0 0.0
    %141 = vmatprep.subr.mxu0 0.0
    %142 = vmatpush1.msra.mxu0 0.0
    %143 = vmatprep.subr.mxu0 0.0
    %144 = vmatpush1.msra.mxu0 0.0
    %145 = vmatprep.subr.mxu0 0.0
    %146 = vmatpush1.msra.mxu0 0.0
    %147 = vmatprep.subr.mxu0 %v99
    %148 = vmatpush1.msra.mxu0 %v98
    %149 = vmatprep.subr.mxu0 %v97
    %150 = vmatpush1.msra.mxu0 %v96
    %151 = vmatprep.subr.mxu0 0.0
    %152 = vmatpush2.msra.mxu0 0.0
    %153 = vmatprep.subr.mxu0 0.0
    %154 = vmatpush2.msra.mxu0 0.0
    %155 = vmatprep.subr.mxu0 0.0
    %156 = vmatpush2.msra.mxu0 0.0
    %157 = vmatprep.subr.mxu0 0.0
    %158 = vmatpush2.msra.mxu0 0.0
    %159 = vmatprep.subr.mxu0 0.0
    %160 = vmatpush2.msra.mxu0 0.0
    %161 = vmatprep.subr.mxu0 0.0
    %162 = vmatpush2.msra.mxu0 0.0
    %163 = vmatprep.subr.mxu0 0.0
    %164 = vmatpush2.msra.mxu0 0.0
    %165 = vmatprep.subr.mxu0 0.0
    %166 = vmatpush2.msra.mxu0 0.0
    %167 = vmatprep.subr.mxu0 0.0
    %168 = vmatpush2.msra.mxu0 0.0
    %169 = vmatprep.subr.mxu0 0.0
    %170 = vmatpush2.msra.mxu0 0.0
    %171 = vmatprep.subr.mxu0 0.0
    %172 = vmatpush2.msra.mxu0 0.0
    %173 = vmatprep.subr.mxu0 0.0
    %174 = vmatpush2.msra.mxu0 0.0
    %175 = vmatprep.subr.mxu0 0.0
    %176 = vmatpush2.msra.mxu0 0.0
    %177 = vmatprep.subr.mxu0 0.0
    %178 = vmatpush2.msra.mxu0 0.0
    %179 = vmatprep.subr.mxu0 0.0
    %180 = vmatpush2.msra.mxu0 0.0
    %181 = vmatprep.subr.mxu0 0.0
    %182 = vmatpush2.msra.mxu0 0.0
    %183 = vmatprep.mubr.f32.mxu0 0.0
    %184 = vmatmul.mubr.f32.gmra.mxu0 %v114
    %v185 = vpop.f32.mrf.mxu0
    %v186 = vadd.f32 %v105, %v185
    %v187 = vpop.f32.mrf.mxu0
    %v188 = vadd.f32 %v109, %v187
    %189 = vmatprep.mubr.f32.mxu0 0.0
    %190 = vmatmul.mubr.f32.gmra.mxu0 %v117
    %v191 = vpop.f32.mrf.mxu0
    %v192 = vadd.f32 %v105, %v191
    %v193 = vpop.f32.mrf.mxu0
    %v194 = vadd.f32 %v109, %v193
    %195 = vdwg.mxu0
    %v196 = vld [vmem:[%s3] sm:$0xff]
    %v197 = vld [vmem:[%s3 + $0x8] sm:$0xff]
    %v198 = vld [vmem:[%s3 + $0x10] sm:$0xff]
    %v199 = vld [vmem:[%s3 + $0x18] sm:$0xff]
    %v200 = vld [vmem:[%s3 + $0x20] sm:$0xff]
    %v201 = vld [vmem:[%s3 + $0x28] sm:$0xff]
    %v202 = vld [vmem:[%s3 + $0x30] sm:$0xff]
    %v203 = vld [vmem:[%s3 + $0x38] sm:$0xff]
    %v205 = vrot.slane %v194, 4
    %vm207 = vcmask 1041408
    %v208 = vsel %vm207, %v186, %v205
    %v210 = vrot.slane 0.0, 6
    %v212 = vsel %vm207, 0.0, %v210
    %vm213 = vcmask 523264
    %v215 = vsel %vm213, %v212, 0
    %217 = vmatprep.subr.mxu0 0.0
    %218 = vmatpush1.msra.mxu0 0.0
    %219 = vmatprep.subr.mxu0 0.0
    %220 = vmatpush1.msra.mxu0 0.0
    %221 = vmatprep.subr.mxu0 0.0
    %222 = vmatpush1.msra.mxu0 0.0
    %223 = vmatprep.subr.mxu0 0.0
    %224 = vmatpush1.msra.mxu0 0.0
    %225 = vmatprep.subr.mxu0 0.0
    %226 = vmatpush1.msra.mxu0 0.0
    %227 = vmatprep.subr.mxu0 0.0
    %228 = vmatpush1.msra.mxu0 0.0
    %229 = vmatprep.subr.mxu0 0.0
    %230 = vmatpush1.msra.mxu0 0.0
    %231 = vmatprep.subr.mxu0 0.0
    %232 = vmatpush1.msra.mxu0 0.0
    %233 = vmatprep.subr.mxu0 0.0
    %234 = vmatpush1.msra.mxu0 %v203
    %235 = vmatprep.subr.mxu0 0.0
    %236 = vmatpush1.msra.mxu0 %v202
    %237 = vmatprep.subr.mxu0 0.0
    %238 = vmatpush1.msra.mxu0 %v201
    %239 = vmatprep.subr.mxu0 0.0
    %240 = vmatpush1.msra.mxu0 %v200
    %241 = vmatprep.subr.mxu0 0.0
    %242 = vmatpush1.msra.mxu0 %v199
    %243 = vmatprep.subr.mxu0 0.0
    %244 = vmatpush1.msra.mxu0 %v198
    %245 = vmatprep.subr.mxu0 0.0
    %246 = vmatpush1.msra.mxu0 %v197
    %247 = vmatprep.subr.mxu0 0.0
    %248 = vmatpush1.msra.mxu0 %v196
    %249 = vmatprep.subr.mxu0 0.0
    %250 = vmatpush2.msra.mxu0 0.0
    %251 = vmatprep.subr.mxu0 0.0
    %252 = vmatpush2.msra.mxu0 0.0
    %253 = vmatprep.subr.mxu0 0.0
    %254 = vmatpush2.msra.mxu0 0.0
    %255 = vmatprep.subr.mxu0 0.0
    %256 = vmatpush2.msra.mxu0 0.0
    %257 = vmatprep.subr.mxu0 0.0
    %258 = vmatpush2.msra.mxu0 0.0
    %259 = vmatprep.subr.mxu0 0.0
    %260 = vmatpush2.msra.mxu0 0.0
    %261 = vmatprep.subr.mxu0 0.0
    %262 = vmatpush2.msra.mxu0 0.0
    %263 = vmatprep.subr.mxu0 0.0
    %264 = vmatpush2.msra.mxu0 0.0
    %265 = vmatprep.subr.mxu0 0.0
    %266 = vmatpush2.msra.mxu0 0.0
    %267 = vmatprep.subr.mxu0 0.0
    %268 = vmatpush2.msra.mxu0 0.0
    %269 = vmatprep.subr.mxu0 0.0
    %270 = vmatpush2.msra.mxu0 0.0
    %271 = vmatprep.subr.mxu0 0.0
    %272 = vmatpush2.msra.mxu0 0.0
    %273 = vmatprep.subr.mxu0 0.0
    %274 = vmatpush2.msra.mxu0 0.0
    %275 = vmatprep.subr.mxu0 0.0
    %276 = vmatpush2.msra.mxu0 0.0
    %277 = vmatprep.subr.mxu0 0.0
    %278 = vmatpush2.msra.mxu0 0.0
    %279 = vmatprep.subr.mxu0 0.0
    %280 = vmatpush2.msra.mxu0 0.0
    %281 = vmatprep.mubr.f32.mxu0 0.0
    %282 = vmatmul.mubr.f32.gmra.mxu0 %v215
    %v283 = vpop.f32.mrf.mxu0
    %v284 = vadd.f32 %v208, %v283
    %v285 = vpop.f32.mrf.mxu0
    %286 = vdwg.mxu0
    %v287 = vxor.u32 %v284, 2147483648
    %v288 = vmul.f32 %v287, 1.442695
    %v289 = vpow.pop %v288
    %v290 = vadd.f32 %v289, 1.0
    %v291 = vrcp.pop %v290
    %v292 = vmul.f32 1.0, %v291
    %v293 = vtanh.pop %v284
    %v294 = vmul.f32 %v292, 0.0
    %296 = vrot.lane.b32.xlu0 %v293, 64
    %v297 = vpop.permute.xlu0 %296
    %v299 = vmul.f32 %v292, %v297
    %301 = vrot.lane.b32.xlu0 %v299, 32
    %v302 = vpop.permute.xlu0 %301
    %v304 = vadd.f32 %v294, %v302
    %v305 = vtanh.pop %v304
    %307 = vrot.lane.b32.xlu0 %v305, 64
    %v308 = vpop.permute.xlu0 %307
    %v310 = vmul.f32 %v292, %v308
    %v312 = vrot.slane %v186, 2
    %v314 = vrot.slane %v194, 2
    %v316 = vsel %vm207, %v312, %v314
    %318 = vrot.lane.b32.xlu0 %v310, 32
    %v319 = vpop.permute.xlu0 %318
    %vm321 = vcmask 261120
    %v322 = vsel %vm321, %v319, 0.0
    %v323 = vrot.slane %v310, 2
    %324 = vrot.lane.b32.xlu0 %v323, 64
    %v325 = vpop.permute.xlu0 %324
    %v327 = vsel %vm321, 0.0, %v325
    %v329 = vrot.slane %v327, 6
    %v331 = vsel %vm207, %v322, %v329
    %v333 = vsel %vm213, %v331, 0
    %335 = vmatprep.subr.mxu0 0.0
    %336 = vmatpush1.msra.mxu0 0.0
    %337 = vmatprep.subr.mxu0 0.0
    %338 = vmatpush1.msra.mxu0 0.0
    %339 = vmatprep.subr.mxu0 0.0
    %340 = vmatpush1.msra.mxu0 0.0
    %341 = vmatprep.subr.mxu0 0.0
    %342 = vmatpush1.msra.mxu0 0.0
    %343 = vmatprep.subr.mxu0 0.0
    %344 = vmatpush1.msra.mxu0 0.0
    %345 = vmatprep.subr.mxu0 0.0
    %346 = vmatpush1.msra.mxu0 0.0
    %347 = vmatprep.subr.mxu0 0.0
    %348 = vmatpush1.msra.mxu0 0.0
    %349 = vmatprep.subr.mxu0 0.0
    %350 = vmatpush1.msra.mxu0 0.0
    %351 = vmatprep.subr.mxu0 0.0
    %352 = vmatpush1.msra.mxu0 %v203
    %353 = vmatprep.subr.mxu0 0.0
    %354 = vmatpush1.msra.mxu0 %v202
    %355 = vmatprep.subr.mxu0 0.0
    %356 = vmatpush1.msra.mxu0 %v201
    %357 = vmatprep.subr.mxu0 0.0
    %358 = vmatpush1.msra.mxu0 %v200
    %359 = vmatprep.subr.mxu0 0.0
    %360 = vmatpush1.msra.mxu0 %v199
    %361 = vmatprep.subr.mxu0 0.0
    %362 = vmatpush1.msra.mxu0 %v198
    %363 = vmatprep.subr.mxu0 0.0
    %364 = vmatpush1.msra.mxu0 %v197
    %365 = vmatprep.subr.mxu0 0.0
    %366 = vmatpush1.msra.mxu0 %v196
    %367 = vmatprep.subr.mxu0 0.0
    %368 = vmatpush2.msra.mxu0 0.0
    %369 = vmatprep.subr.mxu0 0.0
    %370 = vmatpush2.msra.mxu0 0.0
    %371 = vmatprep.subr.mxu0 0.0
    %372 = vmatpush2.msra.mxu0 0.0
    %373 = vmatprep.subr.mxu0 0.0
    %374 = vmatpush2.msra.mxu0 0.0
    %375 = vmatprep.subr.mxu0 0.0
    %376 = vmatpush2.msra.mxu0 0.0
    %377 = vmatprep.subr.mxu0 0.0
    %378 = vmatpush2.msra.mxu0 0.0
    %379 = vmatprep.subr.mxu0 0.0
    %380 = vmatpush2.msra.mxu0 0.0
    %381 = vmatprep.subr.mxu0 0.0
    %382 = vmatpush2.msra.mxu0 0.0
    %383 = vmatprep.subr.mxu0 0.0
    %384 = vmatpush2.msra.mxu0 0.0
    %385 = vmatprep.subr.mxu0 0.0
    %386 = vmatpush2.msra.mxu0 0.0
    %387 = vmatprep.subr.mxu0 0.0
    %388 = vmatpush2.msra.mxu0 0.0
    %389 = vmatprep.subr.mxu0 0.0
    %390 = vmatpush2.msra.mxu0 0.0
    %391 = vmatprep.subr.mxu0 0.0
    %392 = vmatpush2.msra.mxu0 0.0
    %393 = vmatprep.subr.mxu0 0.0
    %394 = vmatpush2.msra.mxu0 0.0
    %395 = vmatprep.subr.mxu0 0.0
    %396 = vmatpush2.msra.mxu0 0.0
    %397 = vmatprep.subr.mxu0 0.0
    %398 = vmatpush2.msra.mxu0 0.0
    %399 = vmatprep.mubr.f32.mxu0 0.0
    %400 = vmatmul.mubr.f32.gmra.mxu0 %v333
    %v401 = vpop.f32.mrf.mxu0
    %v402 = vadd.f32 %v316, %v401
    %v403 = vpop.f32.mrf.mxu0
    %404 = vdwg.mxu0
    %v405 = vxor.u32 %v402, 2147483648
    %v406 = vmul.f32 %v405, 1.442695
    %v407 = vpow.pop %v406
    %v408 = vadd.f32 %v407, 1.0
    %v409 = vrcp.pop %v408
    %v410 = vmul.f32 1.0, %v409
    %v411 = vtanh.pop %v402
    %v412 = vmul.f32 %v410, %v304
    %414 = vrot.lane.b32.xlu0 %v411, 64
    %v415 = vpop.permute.xlu0 %414
    %v417 = vmul.f32 %v410, %v415
    %419 = vrot.lane.b32.xlu0 %v417, 32
    %v420 = vpop.permute.xlu0 %419
    %v422 = vadd.f32 %v412, %v420
    %v423 = vtanh.pop %v422
    %425 = vrot.lane.b32.xlu0 %v423, 64
    %v426 = vpop.permute.xlu0 %425
    %v428 = vmul.f32 %v410, %v426
    %v429 = vrot.slane %v186, 4
    %v431 = vsel %vm207, %v429, %v194
    %433 = vrot.lane.b32.xlu0 %v428, 32
    %v434 = vpop.permute.xlu0 %433
    %v436 = vsel %vm321, %v434, 0.0
    %v437 = vrot.slane %v428, 2
    %438 = vrot.lane.b32.xlu0 %v437, 64
    %v439 = vpop.permute.xlu0 %438
    %v441 = vsel %vm321, 0.0, %v439
    %v443 = vrot.slane %v441, 6
    %v445 = vsel %vm207, %v436, %v443
    %v447 = vsel %vm213, %v445, 0
    %449 = vmatprep.subr.mxu0 0.0
    %450 = vmatpush1.msra.mxu0 0.0
    %451 = vmatprep.subr.mxu0 0.0
    %452 = vmatpush1.msra.mxu0 0.0
    %453 = vmatprep.subr.mxu0 0.0
    %454 = vmatpush1.msra.mxu0 0.0
    %455 = vmatprep.subr.mxu0 0.0
    %456 = vmatpush1.msra.mxu0 0.0
    %457 = vmatprep.subr.mxu0 0.0
    %458 = vmatpush1.msra.mxu0 0.0
    %459 = vmatprep.subr.mxu0 0.0
    %460 = vmatpush1.msra.mxu0 0.0
    %461 = vmatprep.subr.mxu0 0.0
    %462 = vmatpush1.msra.mxu0 0.0
    %463 = vmatprep.subr.mxu0 0.0
    %464 = vmatpush1.msra.mxu0 0.0
    %465 = vmatprep.subr.mxu0 0.0
    %466 = vmatpush1.msra.mxu0 %v203
    %467 = vmatprep.subr.mxu0 0.0
    %468 = vmatpush1.msra.mxu0 %v202
    %469 = vmatprep.subr.mxu0 0.0
    %470 = vmatpush1.msra.mxu0 %v201
    %471 = vmatprep.subr.mxu0 0.0
    %472 = vmatpush1.msra.mxu0 %v200
    %473 = vmatprep.subr.mxu0 0.0
    %474 = vmatpush1.msra.mxu0 %v199
    %475 = vmatprep.subr.mxu0 0.0
    %476 = vmatpush1.msra.mxu0 %v198
    %477 = vmatprep.subr.mxu0 0.0
    %478 = vmatpush1.msra.mxu0 %v197
    %479 = vmatprep.subr.mxu0 0.0
    %480 = vmatpush1.msra.mxu0 %v196
    %481 = vmatprep.subr.mxu0 0.0
    %482 = vmatpush2.msra.mxu0 0.0
    %483 = vmatprep.subr.mxu0 0.0
    %484 = vmatpush2.msra.mxu0 0.0
    %485 = vmatprep.subr.mxu0 0.0
    %486 = vmatpush2.msra.mxu0 0.0
    %487 = vmatprep.subr.mxu0 0.0
    %488 = vmatpush2.msra.mxu0 0.0
    %489 = vmatprep.subr.mxu0 0.0
    %490 = vmatpush2.msra.mxu0 0.0
    %491 = vmatprep.subr.mxu0 0.0
    %492 = vmatpush2.msra.mxu0 0.0
    %493 = vmatprep.subr.mxu0 0.0
    %494 = vmatpush2.msra.mxu0 0.0
    %495 = vmatprep.subr.mxu0 0.0
    %496 = vmatpush2.msra.mxu0 0.0
    %497 = vmatprep.subr.mxu0 0.0
    %498 = vmatpush2.msra.mxu0 0.0
    %499 = vmatprep.subr.mxu0 0.0
    %500 = vmatpush2.msra.mxu0 0.0
    %501 = vmatprep.subr.mxu0 0.0
    %502 = vmatpush2.msra.mxu0 0.0
    %503 = vmatprep.subr.mxu0 0.0
    %504 = vmatpush2.msra.mxu0 0.0
    %505 = vmatprep.subr.mxu0 0.0
    %506 = vmatpush2.msra.mxu0 0.0
    %507 = vmatprep.subr.mxu0 0.0
    %508 = vmatpush2.msra.mxu0 0.0
    %509 = vmatprep.subr.mxu0 0.0
    %510 = vmatpush2.msra.mxu0 0.0
    %511 = vmatprep.subr.mxu0 0.0
    %512 = vmatpush2.msra.mxu0 0.0
    %513 = vmatprep.mubr.f32.mxu0 0.0
    %514 = vmatmul.mubr.f32.gmra.mxu0 %v447
    %v515 = vpop.f32.mrf.mxu0
    %v516 = vadd.f32 %v431, %v515
    %v517 = vpop.f32.mrf.mxu0
    %518 = vdwg.mxu0
    %v519 = vxor.u32 %v516, 2147483648
    %v520 = vmul.f32 %v519, 1.442695
    %v521 = vpow.pop %v520
    %v522 = vadd.f32 %v521, 1.0
    %v523 = vrcp.pop %v522
    %v524 = vmul.f32 1.0, %v523
    %v525 = vtanh.pop %v516
    %v526 = vmul.f32 %v524, %v422
    %528 = vrot.lane.b32.xlu0 %v525, 64
    %v529 = vpop.permute.xlu0 %528
    %v531 = vmul.f32 %v524, %v529
    %533 = vrot.lane.b32.xlu0 %v531, 32
    %v534 = vpop.permute.xlu0 %533
    %v536 = vadd.f32 %v526, %v534
    %v537 = vtanh.pop %v536
    %539 = vrot.lane.b32.xlu0 %v537, 64
    %v540 = vpop.permute.xlu0 %539
    %v542 = vmul.f32 %v524, %v540
    %v543 = vrot.slane %v186, 6
    %v545 = vrot.slane %v194, 6
    %v547 = vsel %vm207, %v543, %v545
    %549 = vrot.lane.b32.xlu0 %v542, 32
    %v550 = vpop.permute.xlu0 %549
    %v552 = vsel %vm321, %v550, 0.0
    %v553 = vrot.slane %v542, 2
    %554 = vrot.lane.b32.xlu0 %v553, 64
    %v555 = vpop.permute.xlu0 %554
    %v557 = vsel %vm321, 0.0, %v555
    %v559 = vrot.slane %v557, 6
    %v561 = vsel %vm207, %v552, %v559
    %v563 = vsel %vm213, %v561, 0
    %565 = vmatprep.subr.mxu0 0.0
    %566 = vmatpush1.msra.mxu0 0.0
    %567 = vmatprep.subr.mxu0 0.0
    %568 = vmatpush1.msra.mxu0 0.0
    %569 = vmatprep.subr.mxu0 0.0
    %570 = vmatpush1.msra.mxu0 0.0
    %571 = vmatprep.subr.mxu0 0.0
    %572 = vmatpush1.msra.mxu0 0.0
    %573 = vmatprep.subr.mxu0 0.0
    %574 = vmatpush1.msra.mxu0 0.0
    %575 = vmatprep.subr.mxu0 0.0
    %576 = vmatpush1.msra.mxu0 0.0
    %577 = vmatprep.subr.mxu0 0.0
    %578 = vmatpush1.msra.mxu0 0.0
    %579 = vmatprep.subr.mxu0 0.0
    %580 = vmatpush1.msra.mxu0 0.0
    %581 = vmatprep.subr.mxu0 0.0
    %582 = vmatpush1.msra.mxu0 %v203
    %583 = vmatprep.subr.mxu0 0.0
    %584 = vmatpush1.msra.mxu0 %v202
    %585 = vmatprep.subr.mxu0 0.0
    %586 = vmatpush1.msra.mxu0 %v201
    %587 = vmatprep.subr.mxu0 0.0
    %588 = vmatpush1.msra.mxu0 %v200
    %589 = vmatprep.subr.mxu0 0.0
    %590 = vmatpush1.msra.mxu0 %v199
    %591 = vmatprep.subr.mxu0 0.0
    %592 = vmatpush1.msra.mxu0 %v198
    %593 = vmatprep.subr.mxu0 0.0
    %594 = vmatpush1.msra.mxu0 %v197
    %595 = vmatprep.subr.mxu0 0.0
    %596 = vmatpush1.msra.mxu0 %v196
    %597 = vmatprep.subr.mxu0 0.0
    %598 = vmatpush2.msra.mxu0 0.0
    %599 = vmatprep.subr.mxu0 0.0
    %600 = vmatpush2.msra.mxu0 0.0
    %601 = vmatprep.subr.mxu0 0.0
    %602 = vmatpush2.msra.mxu0 0.0
    %603 = vmatprep.subr.mxu0 0.0
    %604 = vmatpush2.msra.mxu0 0.0
    %605 = vmatprep.subr.mxu0 0.0
    %606 = vmatpush2.msra.mxu0 0.0
    %607 = vmatprep.subr.mxu0 0.0
    %608 = vmatpush2.msra.mxu0 0.0
    %609 = vmatprep.subr.mxu0 0.0
    %610 = vmatpush2.msra.mxu0 0.0
    %611 = vmatprep.subr.mxu0 0.0
    %612 = vmatpush2.msra.mxu0 0.0
    %613 = vmatprep.subr.mxu0 0.0
    %614 = vmatpush2.msra.mxu0 0.0
    %615 = vmatprep.subr.mxu0 0.0
    %616 = vmatpush2.msra.mxu0 0.0
    %617 = vmatprep.subr.mxu0 0.0
    %618 = vmatpush2.msra.mxu0 0.0
    %619 = vmatprep.subr.mxu0 0.0
    %620 = vmatpush2.msra.mxu0 0.0
    %621 = vmatprep.subr.mxu0 0.0
    %622 = vmatpush2.msra.mxu0 0.0
    %623 = vmatprep.subr.mxu0 0.0
    %624 = vmatpush2.msra.mxu0 0.0
    %625 = vmatprep.subr.mxu0 0.0
    %626 = vmatpush2.msra.mxu0 0.0
    %627 = vmatprep.subr.mxu0 0.0
    %628 = vmatpush2.msra.mxu0 0.0
    %629 = vmatprep.mubr.f32.mxu0 0.0
    %630 = vmatmul.mubr.f32.gmra.mxu0 %v563
    %v631 = vpop.f32.mrf.mxu0
    %v632 = vadd.f32 %v547, %v631
    %v633 = vpop.f32.mrf.mxu0
    %634 = vdwg.mxu0
    %v635 = vxor.u32 %v632, 2147483648
    %v636 = vmul.f32 %v635, 1.442695
    %v637 = vpow.pop %v636
    %v638 = vadd.f32 %v637, 1.0
    %v639 = vrcp.pop %v638
    %v640 = vmul.f32 1.0, %v639
    %v641 = vtanh.pop %v632
    %v642 = vmul.f32 %v640, %v536
    %644 = vrot.lane.b32.xlu0 %v641, 64
    %v645 = vpop.permute.xlu0 %644
    %v647 = vmul.f32 %v640, %v645
    %649 = vrot.lane.b32.xlu0 %v647, 32
    %v650 = vpop.permute.xlu0 %649
    %v652 = vadd.f32 %v642, %v650
    %v653 = vtanh.pop %v652
    %655 = vrot.lane.b32.xlu0 %v653, 64
    %v656 = vpop.permute.xlu0 %655
    %v658 = vmul.f32 %v640, %v656
    %v660 = vrot.slane %v188, 4
    %v662 = vsel %vm207, %v192, %v660
    %664 = vrot.lane.b32.xlu0 %v658, 32
    %v665 = vpop.permute.xlu0 %664
    %v667 = vsel %vm321, %v665, 0.0
    %v668 = vrot.slane %v658, 2
    %669 = vrot.lane.b32.xlu0 %v668, 64
    %v670 = vpop.permute.xlu0 %669
    %v672 = vsel %vm321, 0.0, %v670
    %v674 = vrot.slane %v672, 6
    %v676 = vsel %vm207, %v667, %v674
    %v678 = vsel %vm213, %v676, 0
    %680 = vmatprep.subr.mxu0 0.0
    %681 = vmatpush1.msra.mxu0 0.0
    %682 = vmatprep.subr.mxu0 0.0
    %683 = vmatpush1.msra.mxu0 0.0
    %684 = vmatprep.subr.mxu0 0.0
    %685 = vmatpush1.msra.mxu0 0.0
    %686 = vmatprep.subr.mxu0 0.0
    %687 = vmatpush1.msra.mxu0 0.0
    %688 = vmatprep.subr.mxu0 0.0
    %689 = vmatpush1.msra.mxu0 0.0
    %690 = vmatprep.subr.mxu0 0.0
    %691 = vmatpush1.msra.mxu0 0.0
    %692 = vmatprep.subr.mxu0 0.0
    %693 = vmatpush1.msra.mxu0 0.0
    %694 = vmatprep.subr.mxu0 0.0
    %695 = vmatpush1.msra.mxu0 0.0
    %696 = vmatprep.subr.mxu0 0.0
    %697 = vmatpush1.msra.mxu0 %v203
    %698 = vmatprep.subr.mxu0 0.0
    %699 = vmatpush1.msra.mxu0 %v202
    %700 = vmatprep.subr.mxu0 0.0
    %701 = vmatpush1.msra.mxu0 %v201
    %702 = vmatprep.subr.mxu0 0.0
    %703 = vmatpush1.msra.mxu0 %v200
    %704 = vmatprep.subr.mxu0 0.0
    %705 = vmatpush1.msra.mxu0 %v199
    %706 = vmatprep.subr.mxu0 0.0
    %707 = vmatpush1.msra.mxu0 %v198
    %708 = vmatprep.subr.mxu0 0.0
    %709 = vmatpush1.msra.mxu0 %v197
    %710 = vmatprep.subr.mxu0 0.0
    %711 = vmatpush1.msra.mxu0 %v196
    %712 = vmatprep.subr.mxu0 0.0
    %713 = vmatpush2.msra.mxu0 0.0
    %714 = vmatprep.subr.mxu0 0.0
    %715 = vmatpush2.msra.mxu0 0.0
    %716 = vmatprep.subr.mxu0 0.0
    %717 = vmatpush2.msra.mxu0 0.0
    %718 = vmatprep.subr.mxu0 0.0
    %719 = vmatpush2.msra.mxu0 0.0
    %720 = vmatprep.subr.mxu0 0.0
    %721 = vmatpush2.msra.mxu0 0.0
    %722 = vmatprep.subr.mxu0 0.0
    %723 = vmatpush2.msra.mxu0 0.0
    %724 = vmatprep.subr.mxu0 0.0
    %725 = vmatpush2.msra.mxu0 0.0
    %726 = vmatprep.subr.mxu0 0.0
    %727 = vmatpush2.msra.mxu0 0.0
    %728 = vmatprep.subr.mxu0 0.0
    %729 = vmatpush2.msra.mxu0 0.0
    %730 = vmatprep.subr.mxu0 0.0
    %731 = vmatpush2.msra.mxu0 0.0
    %732 = vmatprep.subr.mxu0 0.0
    %733 = vmatpush2.msra.mxu0 0.0
    %734 = vmatprep.subr.mxu0 0.0
    %735 = vmatpush2.msra.mxu0 0.0
    %736 = vmatprep.subr.mxu0 0.0
    %737 = vmatpush2.msra.mxu0 0.0
    %738 = vmatprep.subr.mxu0 0.0
    %739 = vmatpush2.msra.mxu0 0.0
    %740 = vmatprep.subr.mxu0 0.0
    %741 = vmatpush2.msra.mxu0 0.0
    %742 = vmatprep.subr.mxu0 0.0
    %743 = vmatpush2.msra.mxu0 0.0
    %744 = vmatprep.mubr.f32.mxu0 0.0
    %745 = vmatmul.mubr.f32.gmra.mxu0 %v678
    %v746 = vpop.f32.mrf.mxu0
    %v747 = vadd.f32 %v662, %v746
    %v748 = vpop.f32.mrf.mxu0
    %749 = vdwg.mxu0
    %v750 = vxor.u32 %v747, 2147483648
    %v751 = vmul.f32 %v750, 1.442695
    %v752 = vpow.pop %v751
    %v753 = vadd.f32 %v752, 1.0
    %v754 = vrcp.pop %v753
    %v755 = vmul.f32 1.0, %v754
    %v756 = vtanh.pop %v747
    %v757 = vmul.f32 %v755, %v652
    %759 = vrot.lane.b32.xlu0 %v756, 64
    %v760 = vpop.permute.xlu0 %759
    %v762 = vmul.f32 %v755, %v760
    %764 = vrot.lane.b32.xlu0 %v762, 32
    %v765 = vpop.permute.xlu0 %764
    %v767 = vadd.f32 %v757, %v765
    %v768 = vtanh.pop %v767
    %770 = vrot.lane.b32.xlu0 %v768, 64
    %v771 = vpop.permute.xlu0 %770
    %v773 = vmul.f32 %v755, %v771
    %v775 = vrot.slane %v192, 2
    %v777 = vrot.slane %v188, 2
    %v779 = vsel %vm207, %v775, %v777
    %781 = vrot.lane.b32.xlu0 %v773, 32
    %v782 = vpop.permute.xlu0 %781
    %v784 = vsel %vm321, %v782, 0.0
    %v785 = vrot.slane %v773, 2
    %786 = vrot.lane.b32.xlu0 %v785, 64
    %v787 = vpop.permute.xlu0 %786
    %v789 = vsel %vm321, 0.0, %v787
    %v791 = vrot.slane %v789, 6
    %v793 = vsel %vm207, %v784, %v791
    %v795 = vsel %vm213, %v793, 0
    %797 = vmatprep.subr.mxu0 0.0
    %798 = vmatpush1.msra.mxu0 0.0
    %799 = vmatprep.subr.mxu0 0.0
    %800 = vmatpush1.msra.mxu0 0.0
    %801 = vmatprep.subr.mxu0 0.0
    %802 = vmatpush1.msra.mxu0 0.0
    %803 = vmatprep.subr.mxu0 0.0
    %804 = vmatpush1.msra.mxu0 0.0
    %805 = vmatprep.subr.mxu0 0.0
    %806 = vmatpush1.msra.mxu0 0.0
    %807 = vmatprep.subr.mxu0 0.0
    %808 = vmatpush1.msra.mxu0 0.0
    %809 = vmatprep.subr.mxu0 0.0
    %810 = vmatpush1.msra.mxu0 0.0
    %811 = vmatprep.subr.mxu0 0.0
    %812 = vmatpush1.msra.mxu0 0.0
    %813 = vmatprep.subr.mxu0 0.0
    %814 = vmatpush1.msra.mxu0 %v203
    %815 = vmatprep.subr.mxu0 0.0
    %816 = vmatpush1.msra.mxu0 %v202
    %817 = vmatprep.subr.mxu0 0.0
    %818 = vmatpush1.msra.mxu0 %v201
    %819 = vmatprep.subr.mxu0 0.0
    %820 = vmatpush1.msra.mxu0 %v200
    %821 = vmatprep.subr.mxu0 0.0
    %822 = vmatpush1.msra.mxu0 %v199
    %823 = vmatprep.subr.mxu0 0.0
    %824 = vmatpush1.msra.mxu0 %v198
    %825 = vmatprep.subr.mxu0 0.0
    %826 = vmatpush1.msra.mxu0 %v197
    %827 = vmatprep.subr.mxu0 0.0
    %828 = vmatpush1.msra.mxu0 %v196
    %829 = vmatprep.subr.mxu0 0.0
    %830 = vmatpush2.msra.mxu0 0.0
    %831 = vmatprep.subr.mxu0 0.0
    %832 = vmatpush2.msra.mxu0 0.0
    %833 = vmatprep.subr.mxu0 0.0
    %834 = vmatpush2.msra.mxu0 0.0
    %835 = vmatprep.subr.mxu0 0.0
    %836 = vmatpush2.msra.mxu0 0.0
    %837 = vmatprep.subr.mxu0 0.0
    %838 = vmatpush2.msra.mxu0 0.0
    %839 = vmatprep.subr.mxu0 0.0
    %840 = vmatpush2.msra.mxu0 0.0
    %841 = vmatprep.subr.mxu0 0.0
    %842 = vmatpush2.msra.mxu0 0.0
    %843 = vmatprep.subr.mxu0 0.0
    %844 = vmatpush2.msra.mxu0 0.0
    %845 = vmatprep.subr.mxu0 0.0
    %846 = vmatpush2.msra.mxu0 0.0
    %847 = vmatprep.subr.mxu0 0.0
    %848 = vmatpush2.msra.mxu0 0.0
    %849 = vmatprep.subr.mxu0 0.0
    %850 = vmatpush2.msra.mxu0 0.0
    %851 = vmatprep.subr.mxu0 0.0
    %852 = vmatpush2.msra.mxu0 0.0
    %853 = vmatprep.subr.mxu0 0.0
    %854 = vmatpush2.msra.mxu0 0.0
    %855 = vmatprep.subr.mxu0 0.0
    %856 = vmatpush2.msra.mxu0 0.0
    %857 = vmatprep.subr.mxu0 0.0
    %858 = vmatpush2.msra.mxu0 0.0
    %859 = vmatprep.subr.mxu0 0.0
    %860 = vmatpush2.msra.mxu0 0.0
    %861 = vmatprep.mubr.f32.mxu0 0.0
    %862 = vmatmul.mubr.f32.gmra.mxu0 %v795
    %v863 = vpop.f32.mrf.mxu0
    %v864 = vadd.f32 %v779, %v863
    %v865 = vpop.f32.mrf.mxu0
    %866 = vdwg.mxu0
    %v867 = vxor.u32 %v864, 2147483648
    %v868 = vmul.f32 %v867, 1.442695
    %v869 = vpow.pop %v868
    %v870 = vadd.f32 %v869, 1.0
    %v871 = vrcp.pop %v870
    %v872 = vmul.f32 1.0, %v871
    %v873 = vtanh.pop %v864
    %v874 = vmul.f32 %v872, %v767
    %876 = vrot.lane.b32.xlu0 %v873, 64
    %v877 = vpop.permute.xlu0 %876
    %v879 = vmul.f32 %v872, %v877
    %881 = vrot.lane.b32.xlu0 %v879, 32
    %v882 = vpop.permute.xlu0 %881
    %v884 = vadd.f32 %v874, %v882
    %v885 = vtanh.pop %v884
    %887 = vrot.lane.b32.xlu0 %v885, 64
    %v888 = vpop.permute.xlu0 %887
    %v890 = vmul.f32 %v872, %v888
    %v891 = vrot.slane %v192, 4
    %v893 = vsel %vm207, %v891, %v188
    %895 = vrot.lane.b32.xlu0 %v890, 32
    %v896 = vpop.permute.xlu0 %895
    %v898 = vsel %vm321, %v896, 0.0
    %v899 = vrot.slane %v890, 2
    %900 = vrot.lane.b32.xlu0 %v899, 64
    %v901 = vpop.permute.xlu0 %900
    %v903 = vsel %vm321, 0.0, %v901
    %v905 = vrot.slane %v903, 6
    %v907 = vsel %vm207, %v898, %v905
    %v909 = vsel %vm213, %v907, 0
    %911 = vmatprep.subr.mxu0 0.0
    %912 = vmatpush1.msra.mxu0 0.0
    %913 = vmatprep.subr.mxu0 0.0
    %914 = vmatpush1.msra.mxu0 0.0
    %915 = vmatprep.subr.mxu0 0.0
    %916 = vmatpush1.msra.mxu0 0.0
    %917 = vmatprep.subr.mxu0 0.0
    %918 = vmatpush1.msra.mxu0 0.0
    %919 = vmatprep.subr.mxu0 0.0
    %920 = vmatpush1.msra.mxu0 0.0
    %921 = vmatprep.subr.mxu0 0.0
    %922 = vmatpush1.msra.mxu0 0.0
    %923 = vmatprep.subr.mxu0 0.0
    %924 = vmatpush1.msra.mxu0 0.0
    %925 = vmatprep.subr.mxu0 0.0
    %926 = vmatpush1.msra.mxu0 0.0
    %927 = vmatprep.subr.mxu0 0.0
    %928 = vmatpush1.msra.mxu0 %v203
    %929 = vmatprep.subr.mxu0 0.0
    %930 = vmatpush1.msra.mxu0 %v202
    %931 = vmatprep.subr.mxu0 0.0
    %932 = vmatpush1.msra.mxu0 %v201
    %933 = vmatprep.subr.mxu0 0.0
    %934 = vmatpush1.msra.mxu0 %v200
    %935 = vmatprep.subr.mxu0 0.0
    %936 = vmatpush1.msra.mxu0 %v199
    %937 = vmatprep.subr.mxu0 0.0
    %938 = vmatpush1.msra.mxu0 %v198
    %939 = vmatprep.subr.mxu0 0.0
    %940 = vmatpush1.msra.mxu0 %v197
    %941 = vmatprep.subr.mxu0 0.0
    %942 = vmatpush1.msra.mxu0 %v196
    %943 = vmatprep.subr.mxu0 0.0
    %944 = vmatpush2.msra.mxu0 0.0
    %945 = vmatprep.subr.mxu0 0.0
    %946 = vmatpush2.msra.mxu0 0.0
    %947 = vmatprep.subr.mxu0 0.0
    %948 = vmatpush2.msra.mxu0 0.0
    %949 = vmatprep.subr.mxu0 0.0
    %950 = vmatpush2.msra.mxu0 0.0
    %951 = vmatprep.subr.mxu0 0.0
    %952 = vmatpush2.msra.mxu0 0.0
    %953 = vmatprep.subr.mxu0 0.0
    %954 = vmatpush2.msra.mxu0 0.0
    %955 = vmatprep.subr.mxu0 0.0
    %956 = vmatpush2.msra.mxu0 0.0
    %957 = vmatprep.subr.mxu0 0.0
    %958 = vmatpush2.msra.mxu0 0.0
    %959 = vmatprep.subr.mxu0 0.0
    %960 = vmatpush2.msra.mxu0 0.0
    %961 = vmatprep.subr.mxu0 0.0
    %962 = vmatpush2.msra.mxu0 0.0
    %963 = vmatprep.subr.mxu0 0.0
    %964 = vmatpush2.msra.mxu0 0.0
    %965 = vmatprep.subr.mxu0 0.0
    %966 = vmatpush2.msra.mxu0 0.0
    %967 = vmatprep.subr.mxu0 0.0
    %968 = vmatpush2.msra.mxu0 0.0
    %969 = vmatprep.subr.mxu0 0.0
    %970 = vmatpush2.msra.mxu0 0.0
    %971 = vmatprep.subr.mxu0 0.0
    %972 = vmatpush2.msra.mxu0 0.0
    %973 = vmatprep.subr.mxu0 0.0
    %974 = vmatpush2.msra.mxu0 0.0
    %975 = vmatprep.mubr.f32.mxu0 0.0
    %976 = vmatmul.mubr.f32.gmra.mxu0 %v909
    %v977 = vpop.f32.mrf.mxu0
    %v978 = vadd.f32 %v893, %v977
    %v979 = vpop.f32.mrf.mxu0
    %980 = vdwg.mxu0
    %v981 = vxor.u32 %v978, 2147483648
    %v982 = vmul.f32 %v981, 1.442695
    %v983 = vpow.pop %v982
    %v984 = vadd.f32 %v983, 1.0
    %v985 = vrcp.pop %v984
    %v986 = vmul.f32 1.0, %v985
    %v987 = vtanh.pop %v978
    %v988 = vmul.f32 %v986, %v884
    %990 = vrot.lane.b32.xlu0 %v987, 64
    %v991 = vpop.permute.xlu0 %990
    %v993 = vmul.f32 %v986, %v991
    %995 = vrot.lane.b32.xlu0 %v993, 32
    %v996 = vpop.permute.xlu0 %995
    %v998 = vadd.f32 %v988, %v996
    %v999 = vtanh.pop %v998
    %1001 = vrot.lane.b32.xlu0 %v999, 64
    %v1002 = vpop.permute.xlu0 %1001
    %v1004 = vmul.f32 %v986, %v1002
    %v1005 = vrot.slane %v192, 6
    %v1007 = vrot.slane %v188, 6
    %v1009 = vsel %vm207, %v1005, %v1007
    %1011 = vrot.lane.b32.xlu0 %v1004, 32
    %v1012 = vpop.permute.xlu0 %1011
    %v1014 = vsel %vm321, %v1012, 0.0
    %v1015 = vrot.slane %v1004, 2
    %1016 = vrot.lane.b32.xlu0 %v1015, 64
    %v1017 = vpop.permute.xlu0 %1016
    %v1019 = vsel %vm321, 0.0, %v1017
    %v1021 = vrot.slane %v1019, 6
    %v1023 = vsel %vm207, %v1014, %v1021
    %v1025 = vsel %vm213, %v1023, 0
    %1027 = vmatprep.subr.mxu0 0.0
    %1028 = vmatpush1.msra.mxu0 0.0
    %1029 = vmatprep.subr.mxu0 0.0
    %1030 = vmatpush1.msra.mxu0 0.0
    %1031 = vmatprep.subr.mxu0 0.0
    %1032 = vmatpush1.msra.mxu0 0.0
    %1033 = vmatprep.subr.mxu0 0.0
    %1034 = vmatpush1.msra.mxu0 0.0
    %1035 = vmatprep.subr.mxu0 0.0
    %1036 = vmatpush1.msra.mxu0 0.0
    %1037 = vmatprep.subr.mxu0 0.0
    %1038 = vmatpush1.msra.mxu0 0.0
    %1039 = vmatprep.subr.mxu0 0.0
    %1040 = vmatpush1.msra.mxu0 0.0
    %1041 = vmatprep.subr.mxu0 0.0
    %1042 = vmatpush1.msra.mxu0 0.0
    %1043 = vmatprep.subr.mxu0 0.0
    %1044 = vmatpush1.msra.mxu0 %v203
    %1045 = vmatprep.subr.mxu0 0.0
    %1046 = vmatpush1.msra.mxu0 %v202
    %1047 = vmatprep.subr.mxu0 0.0
    %1048 = vmatpush1.msra.mxu0 %v201
    %1049 = vmatprep.subr.mxu0 0.0
    %1050 = vmatpush1.msra.mxu0 %v200
    %1051 = vmatprep.subr.mxu0 0.0
    %1052 = vmatpush1.msra.mxu0 %v199
    %1053 = vmatprep.subr.mxu0 0.0
    %1054 = vmatpush1.msra.mxu0 %v198
    %1055 = vmatprep.subr.mxu0 0.0
    %1056 = vmatpush1.msra.mxu0 %v197
    %1057 = vmatprep.subr.mxu0 0.0
    %1058 = vmatpush1.msra.mxu0 %v196
    %1059 = vmatprep.subr.mxu0 0.0
    %1060 = vmatpush2.msra.mxu0 0.0
    %1061 = vmatprep.subr.mxu0 0.0
    %1062 = vmatpush2.msra.mxu0 0.0
    %1063 = vmatprep.subr.mxu0 0.0
    %1064 = vmatpush2.msra.mxu0 0.0
    %1065 = vmatprep.subr.mxu0 0.0
    %1066 = vmatpush2.msra.mxu0 0.0
    %1067 = vmatprep.subr.mxu0 0.0
    %1068 = vmatpush2.msra.mxu0 0.0
    %1069 = vmatprep.subr.mxu0 0.0
    %1070 = vmatpush2.msra.mxu0 0.0
    %1071 = vmatprep.subr.mxu0 0.0
    %1072 = vmatpush2.msra.mxu0 0.0
    %1073 = vmatprep.subr.mxu0 0.0
    %1074 = vmatpush2.msra.mxu0 0.0
    %1075 = vmatprep.subr.mxu0 0.0
    %1076 = vmatpush2.msra.mxu0 0.0
    %1077 = vmatprep.subr.mxu0 0.0
    %1078 = vmatpush2.msra.mxu0 0.0
    %1079 = vmatprep.subr.mxu0 0.0
    %1080 = vmatpush2.msra.mxu0 0.0
    %1081 = vmatprep.subr.mxu0 0.0
    %1082 = vmatpush2.msra.mxu0 0.0
    %1083 = vmatprep.subr.mxu0 0.0
    %1084 = vmatpush2.msra.mxu0 0.0
    %1085 = vmatprep.subr.mxu0 0.0
    %1086 = vmatpush2.msra.mxu0 0.0
    %1087 = vmatprep.subr.mxu0 0.0
    %1088 = vmatpush2.msra.mxu0 0.0
    %1089 = vmatprep.subr.mxu0 0.0
    %1090 = vmatpush2.msra.mxu0 0.0
    %1091 = vmatprep.mubr.f32.mxu0 0.0
    %1092 = vmatmul.mubr.f32.gmra.mxu0 %v1025
    %v1093 = vpop.f32.mrf.mxu0
    %v1094 = vadd.f32 %v1009, %v1093
    %v1095 = vpop.f32.mrf.mxu0
    %1096 = vdwg.mxu0
    %v1097 = vxor.u32 %v1094, 2147483648
    %v1098 = vmul.f32 %v1097, 1.442695
    %v1099 = vpow.pop %v1098
    %v1100 = vadd.f32 %v1099, 1.0
    %v1101 = vrcp.pop %v1100
    %v1102 = vmul.f32 1.0, %v1101
    %v1103 = vtanh.pop %v1094
    %v1104 = vmul.f32 %v1102, %v998
    %1106 = vrot.lane.b32.xlu0 %v1103, 64
    %v1107 = vpop.permute.xlu0 %1106
    %v1109 = vmul.f32 %v1102, %v1107
    %1111 = vrot.lane.b32.xlu0 %v1109, 32
    %v1112 = vpop.permute.xlu0 %1111
    %v1114 = vadd.f32 %v1104, %v1112
    %v1115 = vtanh.pop %v1114
    %1117 = vrot.lane.b32.xlu0 %v1115, 64
    %v1118 = vpop.permute.xlu0 %1117
    %v1120 = vmul.f32 %v1102, %v1118
    %v1122 = vrot.slane %v1120, 2
    %1123 = vrot.lane.b32.xlu0 %v1122, 64
    %v1124 = vpop.permute.xlu0 %1123
    %v1126 = vsel %vm321, %v319, %v1124
    %v1127 = vsel %vm321, %v434, %v1017
    %v1128 = vsel %vm321, %v550, %v901
    %v1129 = vsel %vm321, %v665, %v787
    %v1130 = vsel %vm321, %v782, %v670
    %v1131 = vsel %vm321, %v896, %v555
    %v1132 = vsel %vm321, %v1012, %v439
    %1133 = vrot.lane.b32.xlu0 %v1120, 32
    %v1134 = vpop.permute.xlu0 %1133
    %v1136 = vsel %vm321, %v1134, %v325
    %v1138 = vrot.slane %v1127, 6
    %v1141 = vrot.slane %v1128, 4
    %v1144 = vrot.slane %v1129, 2
    %v1147 = vrot.slane %v1131, 6
    %v1150 = vrot.slane %v1132, 4
    %v1153 = vrot.slane %v1136, 2
    %v1155 = vsel %vm207, %v1126, %v1138
    %vm1156 = vcmask 1043456
    %v1157 = vsel %vm1156, %v1155, %v1141
    %vm1158 = vcmask 1045504
    %v1159 = vsel %vm1158, %v1157, %v1144
    %v1160 = vsel %vm207, %v1130, %v1147
    %v1161 = vsel %vm1156, %v1160, %v1150
    %v1162 = vsel %vm1158, %v1161, %v1153
    %v1163 = vld [vmem:[#allocation5] sm:$0xff]
    %v1164 = vld [vmem:[#allocation5 + $0x8] sm:$0xff]
    %v1165 = vld [vmem:[#allocation5 + $0x10] sm:$0xff]
    %v1166 = vld [vmem:[#allocation5 + $0x18] sm:$0xff]
    %v1167 = vld [vmem:[#allocation5 + $0x20] sm:$0xff]
    %v1168 = vld [vmem:[#allocation5 + $0x28] sm:$0xff]
    %v1169 = vld [vmem:[#allocation5 + $0x30] sm:$0xff]
    %v1170 = vld [vmem:[#allocation5 + $0x38] sm:$0xff]
    %v1171 = vld [vmem:[%s5] sm:$0x1]
    %v1173 = vlaneseq
    %v1174 = vshrl.u32 %v1173, 7
    %v1175 = vsub.s32 0, %v1174
    %v1176 = vrot.slane %v1171, %v1175
    %v1179 = vsel %vm213, %v1159, 0
    %v1182 = vsel %vm213, %v1162, 0
    %1184 = vmatprep.subr.mxu0 0.0
    %1185 = vmatpush1.msra.mxu0 0.0
    %1186 = vmatprep.subr.mxu0 0.0
    %1187 = vmatpush1.msra.mxu0 0.0
    %1188 = vmatprep.subr.mxu0 0.0
    %1189 = vmatpush1.msra.mxu0 0.0
    %1190 = vmatprep.subr.mxu0 0.0
    %1191 = vmatpush1.msra.mxu0 0.0
    %1192 = vmatprep.subr.mxu0 0.0
    %1193 = vmatpush1.msra.mxu0 0.0
    %1194 = vmatprep.subr.mxu0 0.0
    %1195 = vmatpush1.msra.mxu0 0.0
    %1196 = vmatprep.subr.mxu0 0.0
    %1197 = vmatpush1.msra.mxu0 0.0
    %1198 = vmatprep.subr.mxu0 0.0
    %1199 = vmatpush1.msra.mxu0 0.0
    %1200 = vmatprep.subr.mxu0 0.0
    %1201 = vmatpush1.msra.mxu0 %v1170
    %1202 = vmatprep.subr.mxu0 0.0
    %1203 = vmatpush1.msra.mxu0 %v1169
    %1204 = vmatprep.subr.mxu0 0.0
    %1205 = vmatpush1.msra.mxu0 %v1168
    %1206 = vmatprep.subr.mxu0 0.0
    %1207 = vmatpush1.msra.mxu0 %v1167
    %1208 = vmatprep.subr.mxu0 0.0
    %1209 = vmatpush1.msra.mxu0 %v1166
    %1210 = vmatprep.subr.mxu0 0.0
    %1211 = vmatpush1.msra.mxu0 %v1165
    %1212 = vmatprep.subr.mxu0 0.0
    %1213 = vmatpush1.msra.mxu0 %v1164
    %1214 = vmatprep.subr.mxu0 0.0
    %1215 = vmatpush1.msra.mxu0 %v1163
    %1216 = vmatprep.subr.mxu0 0.0
    %1217 = vmatpush2.msra.mxu0 0.0
    %1218 = vmatprep.subr.mxu0 0.0
    %1219 = vmatpush2.msra.mxu0 0.0
    %1220 = vmatprep.subr.mxu0 0.0
    %1221 = vmatpush2.msra.mxu0 0.0
    %1222 = vmatprep.subr.mxu0 0.0
    %1223 = vmatpush2.msra.mxu0 0.0
    %1224 = vmatprep.subr.mxu0 0.0
    %1225 = vmatpush2.msra.mxu0 0.0
    %1226 = vmatprep.subr.mxu0 0.0
    %1227 = vmatpush2.msra.mxu0 0.0
    %1228 = vmatprep.subr.mxu0 0.0
    %1229 = vmatpush2.msra.mxu0 0.0
    %1230 = vmatprep.subr.mxu0 0.0
    %1231 = vmatpush2.msra.mxu0 0.0
    %1232 = vmatprep.subr.mxu0 0.0
    %1233 = vmatpush2.msra.mxu0 0.0
    %1234 = vmatprep.subr.mxu0 0.0
    %1235 = vmatpush2.msra.mxu0 0.0
    %1236 = vmatprep.subr.mxu0 0.0
    %1237 = vmatpush2.msra.mxu0 0.0
    %1238 = vmatprep.subr.mxu0 0.0
    %1239 = vmatpush2.msra.mxu0 0.0
    %1240 = vmatprep.subr.mxu0 0.0
    %1241 = vmatpush2.msra.mxu0 0.0
    %1242 = vmatprep.subr.mxu0 0.0
    %1243 = vmatpush2.msra.mxu0 0.0
    %1244 = vmatprep.subr.mxu0 0.0
    %1245 = vmatpush2.msra.mxu0 0.0
    %1246 = vmatprep.subr.mxu0 0.0
    %1247 = vmatpush2.msra.mxu0 0.0
    %1248 = vmatprep.mubr.f32.mxu0 0.0
    %1249 = vmatmul.mubr.f32.gmra.mxu0 %v1179
    %v1250 = vpop.f32.mrf.mxu0
    %v1251 = vadd.f32 %v1176, %v1250
    %v1252 = vpop.f32.mrf.mxu0
    %1253 = vmatprep.mubr.f32.mxu0 0.0
    %1254 = vmatmul.mubr.f32.gmra.mxu0 %v1182
    %v1255 = vpop.f32.mrf.mxu0
    %v1256 = vadd.f32 %v1176, %v1255
    %v1257 = vpop.f32.mrf.mxu0
    %1258 = vdwg.mxu0
    %v1259 = vld [vmem:[#allocation7] sm:$0xff]
    %v1260 = vld [vmem:[#allocation7 + $0x8] sm:$0xff]
    %v1261 = vld [vmem:[#allocation7 + $0x10] sm:$0xff]
    %v1262 = vld [vmem:[#allocation7 + $0x18] sm:$0xff]
    %v1263 = vsel %vm321, 0.0, 0
    %1265 = vmatprep.subr.mxu0 0.0
    %1266 = vmatpush1.msra.mxu0 0.0
    %1267 = vmatprep.subr.mxu0 0.0
    %1268 = vmatpush1.msra.mxu0 0.0
    %1269 = vmatprep.subr.mxu0 0.0
    %1270 = vmatpush1.msra.mxu0 0.0
    %1271 = vmatprep.subr.mxu0 0.0
    %1272 = vmatpush1.msra.mxu0 0.0
    %1273 = vmatprep.subr.mxu0 0.0
    %1274 = vmatpush1.msra.mxu0 0.0
    %1275 = vmatprep.subr.mxu0 0.0
    %1276 = vmatpush1.msra.mxu0 0.0
    %1277 = vmatprep.subr.mxu0 0.0
    %1278 = vmatpush1.msra.mxu0 0.0
    %1279 = vmatprep.subr.mxu0 0.0
    %1280 = vmatpush1.msra.mxu0 0.0
    %1281 = vmatprep.subr.mxu0 0.0
    %1282 = vmatpush1.msra.mxu0 0.0
    %1283 = vmatprep.subr.mxu0 0.0
    %1284 = vmatpush1.msra.mxu0 0.0
    %1285 = vmatprep.subr.mxu0 0.0
    %1286 = vmatpush1.msra.mxu0 0.0
    %1287 = vmatprep.subr.mxu0 0.0
    %1288 = vmatpush1.msra.mxu0 0.0
    %1289 = vmatprep.subr.mxu0 0.0
    %1290 = vmatpush1.msra.mxu0 %v1262
    %1291 = vmatprep.subr.mxu0 0.0
    %1292 = vmatpush1.msra.mxu0 %v1261
    %1293 = vmatprep.subr.mxu0 0.0
    %1294 = vmatpush1.msra.mxu0 %v1260
    %1295 = vmatprep.subr.mxu0 0.0
    %1296 = vmatpush1.msra.mxu0 %v1259
    %1297 = vmatprep.subr.mxu0 0.0
    %1298 = vmatpush2.msra.mxu0 0.0
    %1299 = vmatprep.subr.mxu0 0.0
    %1300 = vmatpush2.msra.mxu0 0.0
    %1301 = vmatprep.subr.mxu0 0.0
    %1302 = vmatpush2.msra.mxu0 0.0
    %1303 = vmatprep.subr.mxu0 0.0
    %1304 = vmatpush2.msra.mxu0 0.0
    %1305 = vmatprep.subr.mxu0 0.0
    %1306 = vmatpush2.msra.mxu0 0.0
    %1307 = vmatprep.subr.mxu0 0.0
    %1308 = vmatpush2.msra.mxu0 0.0
    %1309 = vmatprep.subr.mxu0 0.0
    %1310 = vmatpush2.msra.mxu0 0.0
    %1311 = vmatprep.subr.mxu0 0.0
    %1312 = vmatpush2.msra.mxu0 0.0
    %1313 = vmatprep.subr.mxu0 0.0
    %1314 = vmatpush2.msra.mxu0 0.0
    %1315 = vmatprep.subr.mxu0 0.0
    %1316 = vmatpush2.msra.mxu0 0.0
    %1317 = vmatprep.subr.mxu0 0.0
    %1318 = vmatpush2.msra.mxu0 0.0
    %1319 = vmatprep.subr.mxu0 0.0
    %1320 = vmatpush2.msra.mxu0 0.0
    %1321 = vmatprep.subr.mxu0 0.0
    %1322 = vmatpush2.msra.mxu0 0.0
    %1323 = vmatprep.subr.mxu0 0.0
    %1324 = vmatpush2.msra.mxu0 0.0
    %1325 = vmatprep.subr.mxu0 0.0
    %1326 = vmatpush2.msra.mxu0 0.0
    %1327 = vmatprep.subr.mxu0 0.0
    %1328 = vmatpush2.msra.mxu0 0.0
    %1329 = vmatprep.mubr.f32.mxu0 0.0
    %1330 = vmatmul.mubr.f32.gmra.mxu0 %v1263
    %v1331 = vpop.f32.mrf.mxu0
    %v1332 = vadd.f32 %v1251, %v1331
    %v1333 = vpop.f32.mrf.mxu0
    %1334 = vdwg.mxu0
    %v1335 = vxor.u32 %v1332, 2147483648
    %v1336 = vmul.f32 %v1335, 1.442695
    %v1337 = vpow.pop %v1336
    %v1338 = vadd.f32 %v1337, 1.0
    %v1339 = vrcp.pop %v1338
    %v1340 = vmul.f32 1.0, %v1339
    %v1341 = vtanh.pop %v1332
    %v1342 = vmul.f32 %v1340, 0.0
    %1344 = vrot.lane.b32.xlu0 %v1341, 64
    %v1345 = vpop.permute.xlu0 %1344
    %v1347 = vmul.f32 %v1340, %v1345
    %1349 = vrot.lane.b32.xlu0 %v1347, 32
    %v1350 = vpop.permute.xlu0 %1349
    %v1352 = vadd.f32 %v1342, %v1350
    %v1353 = vtanh.pop %v1352
    %1355 = vrot.lane.b32.xlu0 %v1353, 64
    %v1356 = vpop.permute.xlu0 %1355
    %v1358 = vmul.f32 %v1340, %v1356
    %1360 = vrot.lane.b32.xlu0 %v1358, 32
    %v1361 = vpop.permute.xlu0 %1360
    %v1363 = vrot.slane %v1251, 2
    %v1365 = vsel %vm321, %v1361, 0
    %1367 = vmatprep.subr.mxu0 0.0
    %1368 = vmatpush1.msra.mxu0 0.0
    %1369 = vmatprep.subr.mxu0 0.0
    %1370 = vmatpush1.msra.mxu0 0.0
    %1371 = vmatprep.subr.mxu0 0.0
    %1372 = vmatpush1.msra.mxu0 0.0
    %1373 = vmatprep.subr.mxu0 0.0
    %1374 = vmatpush1.msra.mxu0 0.0
    %1375 = vmatprep.subr.mxu0 0.0
    %1376 = vmatpush1.msra.mxu0 0.0
    %1377 = vmatprep.subr.mxu0 0.0
    %1378 = vmatpush1.msra.mxu0 0.0
    %1379 = vmatprep.subr.mxu0 0.0
    %1380 = vmatpush1.msra.mxu0 0.0
    %1381 = vmatprep.subr.mxu0 0.0
    %1382 = vmatpush1.msra.mxu0 0.0
    %1383 = vmatprep.subr.mxu0 0.0
    %1384 = vmatpush1.msra.mxu0 0.0
    %1385 = vmatprep.subr.mxu0 0.0
    %1386 = vmatpush1.msra.mxu0 0.0
    %1387 = vmatprep.subr.mxu0 0.0
    %1388 = vmatpush1.msra.mxu0 0.0
    %1389 = vmatprep.subr.mxu0 0.0
    %1390 = vmatpush1.msra.mxu0 0.0
    %1391 = vmatprep.subr.mxu0 0.0
    %1392 = vmatpush1.msra.mxu0 %v1262
    %1393 = vmatprep.subr.mxu0 0.0
    %1394 = vmatpush1.msra.mxu0 %v1261
    %1395 = vmatprep.subr.mxu0 0.0
    %1396 = vmatpush1.msra.mxu0 %v1260
    %1397 = vmatprep.subr.mxu0 0.0
    %1398 = vmatpush1.msra.mxu0 %v1259
    %1399 = vmatprep.subr.mxu0 0.0
    %1400 = vmatpush2.msra.mxu0 0.0
    %1401 = vmatprep.subr.mxu0 0.0
    %1402 = vmatpush2.msra.mxu0 0.0
    %1403 = vmatprep.subr.mxu0 0.0
    %1404 = vmatpush2.msra.mxu0 0.0
    %1405 = vmatprep.subr.mxu0 0.0
    %1406 = vmatpush2.msra.mxu0 0.0
    %1407 = vmatprep.subr.mxu0 0.0
    %1408 = vmatpush2.msra.mxu0 0.0
    %1409 = vmatprep.subr.mxu0 0.0
    %1410 = vmatpush2.msra.mxu0 0.0
    %1411 = vmatprep.subr.mxu0 0.0
    %1412 = vmatpush2.msra.mxu0 0.0
    %1413 = vmatprep.subr.mxu0 0.0
    %1414 = vmatpush2.msra.mxu0 0.0
    %1415 = vmatprep.subr.mxu0 0.0
    %1416 = vmatpush2.msra.mxu0 0.0
    %1417 = vmatprep.subr.mxu0 0.0
    %1418 = vmatpush2.msra.mxu0 0.0
    %1419 = vmatprep.subr.mxu0 0.0
    %1420 = vmatpush2.msra.mxu0 0.0
    %1421 = vmatprep.subr.mxu0 0.0
    %1422 = vmatpush2.msra.mxu0 0.0
    %1423 = vmatprep.subr.mxu0 0.0
    %1424 = vmatpush2.msra.mxu0 0.0
    %1425 = vmatprep.subr.mxu0 0.0
    %1426 = vmatpush2.msra.mxu0 0.0
    %1427 = vmatprep.subr.mxu0 0.0
    %1428 = vmatpush2.msra.mxu0 0.0
    %1429 = vmatprep.subr.mxu0 0.0
    %1430 = vmatpush2.msra.mxu0 0.0
    %1431 = vmatprep.mubr.f32.mxu0 0.0
    %1432 = vmatmul.mubr.f32.gmra.mxu0 %v1365
    %v1433 = vpop.f32.mrf.mxu0
    %v1434 = vadd.f32 %v1363, %v1433
    %v1435 = vpop.f32.mrf.mxu0
    %1436 = vdwg.mxu0
    %v1437 = vxor.u32 %v1434, 2147483648
    %v1438 = vmul.f32 %v1437, 1.442695
    %v1439 = vpow.pop %v1438
    %v1440 = vadd.f32 %v1439, 1.0
    %v1441 = vrcp.pop %v1440
    %v1442 = vmul.f32 1.0, %v1441
    %v1443 = vtanh.pop %v1434
    %v1444 = vmul.f32 %v1442, %v1352
    %1446 = vrot.lane.b32.xlu0 %v1443, 64
    %v1447 = vpop.permute.xlu0 %1446
    %v1449 = vmul.f32 %v1442, %v1447
    %1451 = vrot.lane.b32.xlu0 %v1449, 32
    %v1452 = vpop.permute.xlu0 %1451
    %v1454 = vadd.f32 %v1444, %v1452
    %v1455 = vtanh.pop %v1454
    %1457 = vrot.lane.b32.xlu0 %v1455, 64
    %v1458 = vpop.permute.xlu0 %1457
    %v1460 = vmul.f32 %v1442, %v1458
    %1462 = vrot.lane.b32.xlu0 %v1460, 32
    %v1463 = vpop.permute.xlu0 %1462
    %v1464 = vrot.slane %v1251, 4
    %v1466 = vsel %vm321, %v1463, 0
    %1468 = vmatprep.subr.mxu0 0.0
    %1469 = vmatpush1.msra.mxu0 0.0
    %1470 = vmatprep.subr.mxu0 0.0
    %1471 = vmatpush1.msra.mxu0 0.0
    %1472 = vmatprep.subr.mxu0 0.0
    %1473 = vmatpush1.msra.mxu0 0.0
    %1474 = vmatprep.subr.mxu0 0.0
    %1475 = vmatpush1.msra.mxu0 0.0
    %1476 = vmatprep.subr.mxu0 0.0
    %1477 = vmatpush1.msra.mxu0 0.0
    %1478 = vmatprep.subr.mxu0 0.0
    %1479 = vmatpush1.msra.mxu0 0.0
    %1480 = vmatprep.subr.mxu0 0.0
    %1481 = vmatpush1.msra.mxu0 0.0
    %1482 = vmatprep.subr.mxu0 0.0
    %1483 = vmatpush1.msra.mxu0 0.0
    %1484 = vmatprep.subr.mxu0 0.0
    %1485 = vmatpush1.msra.mxu0 0.0
    %1486 = vmatprep.subr.mxu0 0.0
    %1487 = vmatpush1.msra.mxu0 0.0
    %1488 = vmatprep.subr.mxu0 0.0
    %1489 = vmatpush1.msra.mxu0 0.0
    %1490 = vmatprep.subr.mxu0 0.0
    %1491 = vmatpush1.msra.mxu0 0.0
    %1492 = vmatprep.subr.mxu0 0.0
    %1493 = vmatpush1.msra.mxu0 %v1262
    %1494 = vmatprep.subr.mxu0 0.0
    %1495 = vmatpush1.msra.mxu0 %v1261
    %1496 = vmatprep.subr.mxu0 0.0
    %1497 = vmatpush1.msra.mxu0 %v1260
    %1498 = vmatprep.subr.mxu0 0.0
    %1499 = vmatpush1.msra.mxu0 %v1259
    %1500 = vmatprep.subr.mxu0 0.0
    %1501 = vmatpush2.msra.mxu0 0.0
    %1502 = vmatprep.subr.mxu0 0.0
    %1503 = vmatpush2.msra.mxu0 0.0
    %1504 = vmatprep.subr.mxu0 0.0
    %1505 = vmatpush2.msra.mxu0 0.0
    %1506 = vmatprep.subr.mxu0 0.0
    %1507 = vmatpush2.msra.mxu0 0.0
    %1508 = vmatprep.subr.mxu0 0.0
    %1509 = vmatpush2.msra.mxu0 0.0
    %1510 = vmatprep.subr.mxu0 0.0
    %1511 = vmatpush2.msra.mxu0 0.0
    %1512 = vmatprep.subr.mxu0 0.0
    %1513 = vmatpush2.msra.mxu0 0.0
    %1514 = vmatprep.subr.mxu0 0.0
    %1515 = vmatpush2.msra.mxu0 0.0
    %1516 = vmatprep.subr.mxu0 0.0
    %1517 = vmatpush2.msra.mxu0 0.0
    %1518 = vmatprep.subr.mxu0 0.0
    %1519 = vmatpush2.msra.mxu0 0.0
    %1520 = vmatprep.subr.mxu0 0.0
    %1521 = vmatpush2.msra.mxu0 0.0
    %1522 = vmatprep.subr.mxu0 0.0
    %1523 = vmatpush2.msra.mxu0 0.0
    %1524 = vmatprep.subr.mxu0 0.0
    %1525 = vmatpush2.msra.mxu0 0.0
    %1526 = vmatprep.subr.mxu0 0.0
    %1527 = vmatpush2.msra.mxu0 0.0
    %1528 = vmatprep.subr.mxu0 0.0
    %1529 = vmatpush2.msra.mxu0 0.0
    %1530 = vmatprep.subr.mxu0 0.0
    %1531 = vmatpush2.msra.mxu0 0.0
    %1532 = vmatprep.mubr.f32.mxu0 0.0
    %1533 = vmatmul.mubr.f32.gmra.mxu0 %v1466
    %v1534 = vpop.f32.mrf.mxu0
    %v1535 = vadd.f32 %v1464, %v1534
    %v1536 = vpop.f32.mrf.mxu0
    %1537 = vdwg.mxu0
    %v1538 = vxor.u32 %v1535, 2147483648
    %v1539 = vmul.f32 %v1538, 1.442695
    %v1540 = vpow.pop %v1539
    %v1541 = vadd.f32 %v1540, 1.0
    %v1542 = vrcp.pop %v1541
    %v1543 = vmul.f32 1.0, %v1542
    %v1544 = vtanh.pop %v1535
    %v1545 = vmul.f32 %v1543, %v1454
    %1547 = vrot.lane.b32.xlu0 %v1544, 64
    %v1548 = vpop.permute.xlu0 %1547
    %v1550 = vmul.f32 %v1543, %v1548
    %1552 = vrot.lane.b32.xlu0 %v1550, 32
    %v1553 = vpop.permute.xlu0 %1552
    %v1555 = vadd.f32 %v1545, %v1553
    %v1556 = vtanh.pop %v1555
    %1558 = vrot.lane.b32.xlu0 %v1556, 64
    %v1559 = vpop.permute.xlu0 %1558
    %v1561 = vmul.f32 %v1543, %v1559
    %1563 = vrot.lane.b32.xlu0 %v1561, 32
    %v1564 = vpop.permute.xlu0 %1563
    %v1565 = vrot.slane %v1251, 6
    %v1567 = vsel %vm321, %v1564, 0
    %1569 = vmatprep.subr.mxu0 0.0
    %1570 = vmatpush1.msra.mxu0 0.0
    %1571 = vmatprep.subr.mxu0 0.0
    %1572 = vmatpush1.msra.mxu0 0.0
    %1573 = vmatprep.subr.mxu0 0.0
    %1574 = vmatpush1.msra.mxu0 0.0
    %1575 = vmatprep.subr.mxu0 0.0
    %1576 = vmatpush1.msra.mxu0 0.0
    %1577 = vmatprep.subr.mxu0 0.0
    %1578 = vmatpush1.msra.mxu0 0.0
    %1579 = vmatprep.subr.mxu0 0.0
    %1580 = vmatpush1.msra.mxu0 0.0
    %1581 = vmatprep.subr.mxu0 0.0
    %1582 = vmatpush1.msra.mxu0 0.0
    %1583 = vmatprep.subr.mxu0 0.0
    %1584 = vmatpush1.msra.mxu0 0.0
    %1585 = vmatprep.subr.mxu0 0.0
    %1586 = vmatpush1.msra.mxu0 0.0
    %1587 = vmatprep.subr.mxu0 0.0
    %1588 = vmatpush1.msra.mxu0 0.0
    %1589 = vmatprep.subr.mxu0 0.0
    %1590 = vmatpush1.msra.mxu0 0.0
    %1591 = vmatprep.subr.mxu0 0.0
    %1592 = vmatpush1.msra.mxu0 0.0
    %1593 = vmatprep.subr.mxu0 0.0
    %1594 = vmatpush1.msra.mxu0 %v1262
    %1595 = vmatprep.subr.mxu0 0.0
    %1596 = vmatpush1.msra.mxu0 %v1261
    %1597 = vmatprep.subr.mxu0 0.0
    %1598 = vmatpush1.msra.mxu0 %v1260
    %1599 = vmatprep.subr.mxu0 0.0
    %1600 = vmatpush1.msra.mxu0 %v1259
    %1601 = vmatprep.subr.mxu0 0.0
    %1602 = vmatpush2.msra.mxu0 0.0
    %1603 = vmatprep.subr.mxu0 0.0
    %1604 = vmatpush2.msra.mxu0 0.0
    %1605 = vmatprep.subr.mxu0 0.0
    %1606 = vmatpush2.msra.mxu0 0.0
    %1607 = vmatprep.subr.mxu0 0.0
    %1608 = vmatpush2.msra.mxu0 0.0
    %1609 = vmatprep.subr.mxu0 0.0
    %1610 = vmatpush2.msra.mxu0 0.0
    %1611 = vmatprep.subr.mxu0 0.0
    %1612 = vmatpush2.msra.mxu0 0.0
    %1613 = vmatprep.subr.mxu0 0.0
    %1614 = vmatpush2.msra.mxu0 0.0
    %1615 = vmatprep.subr.mxu0 0.0
    %1616 = vmatpush2.msra.mxu0 0.0
    %1617 = vmatprep.subr.mxu0 0.0
    %1618 = vmatpush2.msra.mxu0 0.0
    %1619 = vmatprep.subr.mxu0 0.0
    %1620 = vmatpush2.msra.mxu0 0.0
    %1621 = vmatprep.subr.mxu0 0.0
    %1622 = vmatpush2.msra.mxu0 0.0
    %1623 = vmatprep.subr.mxu0 0.0
    %1624 = vmatpush2.msra.mxu0 0.0
    %1625 = vmatprep.subr.mxu0 0.0
    %1626 = vmatpush2.msra.mxu0 0.0
    %1627 = vmatprep.subr.mxu0 0.0
    %1628 = vmatpush2.msra.mxu0 0.0
    %1629 = vmatprep.subr.mxu0 0.0
    %1630 = vmatpush2.msra.mxu0 0.0
    %1631 = vmatprep.subr.mxu0 0.0
    %1632 = vmatpush2.msra.mxu0 0.0
    %1633 = vmatprep.mubr.f32.mxu0 0.0
    %1634 = vmatmul.mubr.f32.gmra.mxu0 %v1567
    %v1635 = vpop.f32.mrf.mxu0
    %v1636 = vadd.f32 %v1565, %v1635
    %v1637 = vpop.f32.mrf.mxu0
    %1638 = vdwg.mxu0
    %v1639 = vxor.u32 %v1636, 2147483648
    %v1640 = vmul.f32 %v1639, 1.442695
    %v1641 = vpow.pop %v1640
    %v1642 = vadd.f32 %v1641, 1.0
    %v1643 = vrcp.pop %v1642
    %v1644 = vmul.f32 1.0, %v1643
    %v1645 = vtanh.pop %v1636
    %v1646 = vmul.f32 %v1644, %v1555
    %1648 = vrot.lane.b32.xlu0 %v1645, 64
    %v1649 = vpop.permute.xlu0 %1648
    %v1651 = vmul.f32 %v1644, %v1649
    %1653 = vrot.lane.b32.xlu0 %v1651, 32
    %v1654 = vpop.permute.xlu0 %1653
    %v1656 = vadd.f32 %v1646, %v1654
    %v1657 = vtanh.pop %v1656
    %1659 = vrot.lane.b32.xlu0 %v1657, 64
    %v1660 = vpop.permute.xlu0 %1659
    %v1662 = vmul.f32 %v1644, %v1660
    %1664 = vrot.lane.b32.xlu0 %v1662, 32
    %v1665 = vpop.permute.xlu0 %1664
    %v1666 = vsel %vm321, %v1665, 0
    %1668 = vmatprep.subr.mxu0 0.0
    %1669 = vmatpush1.msra.mxu0 0.0
    %1670 = vmatprep.subr.mxu0 0.0
    %1671 = vmatpush1.msra.mxu0 0.0
    %1672 = vmatprep.subr.mxu0 0.0
    %1673 = vmatpush1.msra.mxu0 0.0
    %1674 = vmatprep.subr.mxu0 0.0
    %1675 = vmatpush1.msra.mxu0 0.0
    %1676 = vmatprep.subr.mxu0 0.0
    %1677 = vmatpush1.msra.mxu0 0.0
    %1678 = vmatprep.subr.mxu0 0.0
    %1679 = vmatpush1.msra.mxu0 0.0
    %1680 = vmatprep.subr.mxu0 0.0
    %1681 = vmatpush1.msra.mxu0 0.0
    %1682 = vmatprep.subr.mxu0 0.0
    %1683 = vmatpush1.msra.mxu0 0.0
    %1684 = vmatprep.subr.mxu0 0.0
    %1685 = vmatpush1.msra.mxu0 0.0
    %1686 = vmatprep.subr.mxu0 0.0
    %1687 = vmatpush1.msra.mxu0 0.0
    %1688 = vmatprep.subr.mxu0 0.0
    %1689 = vmatpush1.msra.mxu0 0.0
    %1690 = vmatprep.subr.mxu0 0.0
    %1691 = vmatpush1.msra.mxu0 0.0
    %1692 = vmatprep.subr.mxu0 0.0
    %1693 = vmatpush1.msra.mxu0 %v1262
    %1694 = vmatprep.subr.mxu0 0.0
    %1695 = vmatpush1.msra.mxu0 %v1261
    %1696 = vmatprep.subr.mxu0 0.0
    %1697 = vmatpush1.msra.mxu0 %v1260
    %1698 = vmatprep.subr.mxu0 0.0
    %1699 = vmatpush1.msra.mxu0 %v1259
    %1700 = vmatprep.subr.mxu0 0.0
    %1701 = vmatpush2.msra.mxu0 0.0
    %1702 = vmatprep.subr.mxu0 0.0
    %1703 = vmatpush2.msra.mxu0 0.0
    %1704 = vmatprep.subr.mxu0 0.0
    %1705 = vmatpush2.msra.mxu0 0.0
    %1706 = vmatprep.subr.mxu0 0.0
    %1707 = vmatpush2.msra.mxu0 0.0
    %1708 = vmatprep.subr.mxu0 0.0
    %1709 = vmatpush2.msra.mxu0 0.0
    %1710 = vmatprep.subr.mxu0 0.0
    %1711 = vmatpush2.msra.mxu0 0.0
    %1712 = vmatprep.subr.mxu0 0.0
    %1713 = vmatpush2.msra.mxu0 0.0
    %1714 = vmatprep.subr.mxu0 0.0
    %1715 = vmatpush2.msra.mxu0 0.0
    %1716 = vmatprep.subr.mxu0 0.0
    %1717 = vmatpush2.msra.mxu0 0.0
    %1718 = vmatprep.subr.mxu0 0.0
    %1719 = vmatpush2.msra.mxu0 0.0
    %1720 = vmatprep.subr.mxu0 0.0
    %1721 = vmatpush2.msra.mxu0 0.0
    %1722 = vmatprep.subr.mxu0 0.0
    %1723 = vmatpush2.msra.mxu0 0.0
    %1724 = vmatprep.subr.mxu0 0.0
    %1725 = vmatpush2.msra.mxu0 0.0
    %1726 = vmatprep.subr.mxu0 0.0
    %1727 = vmatpush2.msra.mxu0 0.0
    %1728 = vmatprep.subr.mxu0 0.0
    %1729 = vmatpush2.msra.mxu0 0.0
    %1730 = vmatprep.subr.mxu0 0.0
    %1731 = vmatpush2.msra.mxu0 0.0
    %1732 = vmatprep.mubr.f32.mxu0 0.0
    %1733 = vmatmul.mubr.f32.gmra.mxu0 %v1666
    %v1734 = vpop.f32.mrf.mxu0
    %v1735 = vadd.f32 %v1256, %v1734
    %v1736 = vpop.f32.mrf.mxu0
    %1737 = vdwg.mxu0
    %v1738 = vxor.u32 %v1735, 2147483648
    %v1739 = vmul.f32 %v1738, 1.442695
    %v1740 = vpow.pop %v1739
    %v1741 = vadd.f32 %v1740, 1.0
    %v1742 = vrcp.pop %v1741
    %v1743 = vmul.f32 1.0, %v1742
    %v1744 = vtanh.pop %v1735
    %v1745 = vmul.f32 %v1743, %v1656
    %1747 = vrot.lane.b32.xlu0 %v1744, 64
    %v1748 = vpop.permute.xlu0 %1747
    %v1750 = vmul.f32 %v1743, %v1748
    %1752 = vrot.lane.b32.xlu0 %v1750, 32
    %v1753 = vpop.permute.xlu0 %1752
    %v1755 = vadd.f32 %v1745, %v1753
    %v1756 = vtanh.pop %v1755
    %1758 = vrot.lane.b32.xlu0 %v1756, 64
    %v1759 = vpop.permute.xlu0 %1758
    %v1761 = vmul.f32 %v1743, %v1759
    %1763 = vrot.lane.b32.xlu0 %v1761, 32
    %v1764 = vpop.permute.xlu0 %1763
    %v1766 = vrot.slane %v1256, 2
    %v1768 = vsel %vm321, %v1764, 0
    %1770 = vmatprep.subr.mxu0 0.0
    %1771 = vmatpush1.msra.mxu0 0.0
    %1772 = vmatprep.subr.mxu0 0.0
    %1773 = vmatpush1.msra.mxu0 0.0
    %1774 = vmatprep.subr.mxu0 0.0
    %1775 = vmatpush1.msra.mxu0 0.0
    %1776 = vmatprep.subr.mxu0 0.0
    %1777 = vmatpush1.msra.mxu0 0.0
    %1778 = vmatprep.subr.mxu0 0.0
    %1779 = vmatpush1.msra.mxu0 0.0
    %1780 = vmatprep.subr.mxu0 0.0
    %1781 = vmatpush1.msra.mxu0 0.0
    %1782 = vmatprep.subr.mxu0 0.0
    %1783 = vmatpush1.msra.mxu0 0.0
    %1784 = vmatprep.subr.mxu0 0.0
    %1785 = vmatpush1.msra.mxu0 0.0
    %1786 = vmatprep.subr.mxu0 0.0
    %1787 = vmatpush1.msra.mxu0 0.0
    %1788 = vmatprep.subr.mxu0 0.0
    %1789 = vmatpush1.msra.mxu0 0.0
    %1790 = vmatprep.subr.mxu0 0.0
    %1791 = vmatpush1.msra.mxu0 0.0
    %1792 = vmatprep.subr.mxu0 0.0
    %1793 = vmatpush1.msra.mxu0 0.0
    %1794 = vmatprep.subr.mxu0 0.0
    %1795 = vmatpush1.msra.mxu0 %v1262
    %1796 = vmatprep.subr.mxu0 0.0
    %1797 = vmatpush1.msra.mxu0 %v1261
    %1798 = vmatprep.subr.mxu0 0.0
    %1799 = vmatpush1.msra.mxu0 %v1260
    %1800 = vmatprep.subr.mxu0 0.0
    %1801 = vmatpush1.msra.mxu0 %v1259
    %1802 = vmatprep.subr.mxu0 0.0
    %1803 = vmatpush2.msra.mxu0 0.0
    %1804 = vmatprep.subr.mxu0 0.0
    %1805 = vmatpush2.msra.mxu0 0.0
    %1806 = vmatprep.subr.mxu0 0.0
    %1807 = vmatpush2.msra.mxu0 0.0
    %1808 = vmatprep.subr.mxu0 0.0
    %1809 = vmatpush2.msra.mxu0 0.0
    %1810 = vmatprep.subr.mxu0 0.0
    %1811 = vmatpush2.msra.mxu0 0.0
    %1812 = vmatprep.subr.mxu0 0.0
    %1813 = vmatpush2.msra.mxu0 0.0
    %1814 = vmatprep.subr.mxu0 0.0
    %1815 = vmatpush2.msra.mxu0 0.0
    %1816 = vmatprep.subr.mxu0 0.0
    %1817 = vmatpush2.msra.mxu0 0.0
    %1818 = vmatprep.subr.mxu0 0.0
    %1819 = vmatpush2.msra.mxu0 0.0
    %1820 = vmatprep.subr.mxu0 0.0
    %1821 = vmatpush2.msra.mxu0 0.0
    %1822 = vmatprep.subr.mxu0 0.0
    %1823 = vmatpush2.msra.mxu0 0.0
    %1824 = vmatprep.subr.mxu0 0.0
    %1825 = vmatpush2.msra.mxu0 0.0
    %1826 = vmatprep.subr.mxu0 0.0
    %1827 = vmatpush2.msra.mxu0 0.0
    %1828 = vmatprep.subr.mxu0 0.0
    %1829 = vmatpush2.msra.mxu0 0.0
    %1830 = vmatprep.subr.mxu0 0.0
    %1831 = vmatpush2.msra.mxu0 0.0
    %1832 = vmatprep.subr.mxu0 0.0
    %1833 = vmatpush2.msra.mxu0 0.0
    %1834 = vmatprep.mubr.f32.mxu0 0.0
    %1835 = vmatmul.mubr.f32.gmra.mxu0 %v1768
    %v1836 = vpop.f32.mrf.mxu0
    %v1837 = vadd.f32 %v1766, %v1836
    %v1838 = vpop.f32.mrf.mxu0
    %1839 = vdwg.mxu0
    %v1840 = vxor.u32 %v1837, 2147483648
    %v1841 = vmul.f32 %v1840, 1.442695
    %v1842 = vpow.pop %v1841
    %v1843 = vadd.f32 %v1842, 1.0
    %v1844 = vrcp.pop %v1843
    %v1845 = vmul.f32 1.0, %v1844
    %v1846 = vtanh.pop %v1837
    %v1847 = vmul.f32 %v1845, %v1755
    %1849 = vrot.lane.b32.xlu0 %v1846, 64
    %v1850 = vpop.permute.xlu0 %1849
    %v1852 = vmul.f32 %v1845, %v1850
    %1854 = vrot.lane.b32.xlu0 %v1852, 32
    %v1855 = vpop.permute.xlu0 %1854
    %v1857 = vadd.f32 %v1847, %v1855
    %v1858 = vtanh.pop %v1857
    %1860 = vrot.lane.b32.xlu0 %v1858, 64
    %v1861 = vpop.permute.xlu0 %1860
    %v1863 = vmul.f32 %v1845, %v1861
    %1865 = vrot.lane.b32.xlu0 %v1863, 32
    %v1866 = vpop.permute.xlu0 %1865
    %v1867 = vrot.slane %v1256, 4
    %v1869 = vsel %vm321, %v1866, 0
    %1871 = vmatprep.subr.mxu0 0.0
    %1872 = vmatpush1.msra.mxu0 0.0
    %1873 = vmatprep.subr.mxu0 0.0
    %1874 = vmatpush1.msra.mxu0 0.0
    %1875 = vmatprep.subr.mxu0 0.0
    %1876 = vmatpush1.msra.mxu0 0.0
    %1877 = vmatprep.subr.mxu0 0.0
    %1878 = vmatpush1.msra.mxu0 0.0
    %1879 = vmatprep.subr.mxu0 0.0
    %1880 = vmatpush1.msra.mxu0 0.0
    %1881 = vmatprep.subr.mxu0 0.0
    %1882 = vmatpush1.msra.mxu0 0.0
    %1883 = vmatprep.subr.mxu0 0.0
    %1884 = vmatpush1.msra.mxu0 0.0
    %1885 = vmatprep.subr.mxu0 0.0
    %1886 = vmatpush1.msra.mxu0 0.0
    %1887 = vmatprep.subr.mxu0 0.0
    %1888 = vmatpush1.msra.mxu0 0.0
    %1889 = vmatprep.subr.mxu0 0.0
    %1890 = vmatpush1.msra.mxu0 0.0
    %1891 = vmatprep.subr.mxu0 0.0
    %1892 = vmatpush1.msra.mxu0 0.0
    %1893 = vmatprep.subr.mxu0 0.0
    %1894 = vmatpush1.msra.mxu0 0.0
    %1895 = vmatprep.subr.mxu0 0.0
    %1896 = vmatpush1.msra.mxu0 %v1262
    %1897 = vmatprep.subr.mxu0 0.0
    %1898 = vmatpush1.msra.mxu0 %v1261
    %1899 = vmatprep.subr.mxu0 0.0
    %1900 = vmatpush1.msra.mxu0 %v1260
    %1901 = vmatprep.subr.mxu0 0.0
    %1902 = vmatpush1.msra.mxu0 %v1259
    %1903 = vmatprep.subr.mxu0 0.0
    %1904 = vmatpush2.msra.mxu0 0.0
    %1905 = vmatprep.subr.mxu0 0.0
    %1906 = vmatpush2.msra.mxu0 0.0
    %1907 = vmatprep.subr.mxu0 0.0
    %1908 = vmatpush2.msra.mxu0 0.0
    %1909 = vmatprep.subr.mxu0 0.0
    %1910 = vmatpush2.msra.mxu0 0.0
    %1911 = vmatprep.subr.mxu0 0.0
    %1912 = vmatpush2.msra.mxu0 0.0
    %1913 = vmatprep.subr.mxu0 0.0
    %1914 = vmatpush2.msra.mxu0 0.0
    %1915 = vmatprep.subr.mxu0 0.0
    %1916 = vmatpush2.msra.mxu0 0.0
    %1917 = vmatprep.subr.mxu0 0.0
    %1918 = vmatpush2.msra.mxu0 0.0
    %1919 = vmatprep.subr.mxu0 0.0
    %1920 = vmatpush2.msra.mxu0 0.0
    %1921 = vmatprep.subr.mxu0 0.0
    %1922 = vmatpush2.msra.mxu0 0.0
    %1923 = vmatprep.subr.mxu0 0.0
    %1924 = vmatpush2.msra.mxu0 0.0
    %1925 = vmatprep.subr.mxu0 0.0
    %1926 = vmatpush2.msra.mxu0 0.0
    %1927 = vmatprep.subr.mxu0 0.0
    %1928 = vmatpush2.msra.mxu0 0.0
    %1929 = vmatprep.subr.mxu0 0.0
    %1930 = vmatpush2.msra.mxu0 0.0
    %1931 = vmatprep.subr.mxu0 0.0
    %1932 = vmatpush2.msra.mxu0 0.0
    %1933 = vmatprep.subr.mxu0 0.0
    %1934 = vmatpush2.msra.mxu0 0.0
    %1935 = vmatprep.mubr.f32.mxu0 0.0
    %1936 = vmatmul.mubr.f32.gmra.mxu0 %v1869
    %v1937 = vpop.f32.mrf.mxu0
    %v1938 = vadd.f32 %v1867, %v1937
    %v1939 = vpop.f32.mrf.mxu0
    %1940 = vdwg.mxu0
    %v1941 = vxor.u32 %v1938, 2147483648
    %v1942 = vmul.f32 %v1941, 1.442695
    %v1943 = vpow.pop %v1942
    %v1944 = vadd.f32 %v1943, 1.0
    %v1945 = vrcp.pop %v1944
    %v1946 = vmul.f32 1.0, %v1945
    %v1947 = vtanh.pop %v1938
    %v1948 = vmul.f32 %v1946, %v1857
    %1950 = vrot.lane.b32.xlu0 %v1947, 64
    %v1951 = vpop.permute.xlu0 %1950
    %v1953 = vmul.f32 %v1946, %v1951
    %1955 = vrot.lane.b32.xlu0 %v1953, 32
    %v1956 = vpop.permute.xlu0 %1955
    %v1958 = vadd.f32 %v1948, %v1956
    %v1959 = vtanh.pop %v1958
    %1961 = vrot.lane.b32.xlu0 %v1959, 64
    %v1962 = vpop.permute.xlu0 %1961
    %v1964 = vmul.f32 %v1946, %v1962
    %1966 = vrot.lane.b32.xlu0 %v1964, 32
    %v1967 = vpop.permute.xlu0 %1966
    %v1968 = vrot.slane %v1256, 6
    %v1970 = vsel %vm321, %v1967, 0
    %1972 = vmatprep.subr.mxu0 0.0
    %1973 = vmatpush1.msra.mxu0 0.0
    %1974 = vmatprep.subr.mxu0 0.0
    %1975 = vmatpush1.msra.mxu0 0.0
    %1976 = vmatprep.subr.mxu0 0.0
    %1977 = vmatpush1.msra.mxu0 0.0
    %1978 = vmatprep.subr.mxu0 0.0
    %1979 = vmatpush1.msra.mxu0 0.0
    %1980 = vmatprep.subr.mxu0 0.0
    %1981 = vmatpush1.msra.mxu0 0.0
    %1982 = vmatprep.subr.mxu0 0.0
    %1983 = vmatpush1.msra.mxu0 0.0
    %1984 = vmatprep.subr.mxu0 0.0
    %1985 = vmatpush1.msra.mxu0 0.0
    %1986 = vmatprep.subr.mxu0 0.0
    %1987 = vmatpush1.msra.mxu0 0.0
    %1988 = vmatprep.subr.mxu0 0.0
    %1989 = vmatpush1.msra.mxu0 0.0
    %1990 = vmatprep.subr.mxu0 0.0
    %1991 = vmatpush1.msra.mxu0 0.0
    %1992 = vmatprep.subr.mxu0 0.0
    %1993 = vmatpush1.msra.mxu0 0.0
    %1994 = vmatprep.subr.mxu0 0.0
    %1995 = vmatpush1.msra.mxu0 0.0
    %1996 = vmatprep.subr.mxu0 0.0
    %1997 = vmatpush1.msra.mxu0 %v1262
    %1998 = vmatprep.subr.mxu0 0.0
    %1999 = vmatpush1.msra.mxu0 %v1261
    %2000 = vmatprep.subr.mxu0 0.0
    %2001 = vmatpush1.msra.mxu0 %v1260
    %2002 = vmatprep.subr.mxu0 0.0
    %2003 = vmatpush1.msra.mxu0 %v1259
    %2004 = vmatprep.subr.mxu0 0.0
    %2005 = vmatpush2.msra.mxu0 0.0
    %2006 = vmatprep.subr.mxu0 0.0
    %2007 = vmatpush2.msra.mxu0 0.0
    %2008 = vmatprep.subr.mxu0 0.0
    %2009 = vmatpush2.msra.mxu0 0.0
    %2010 = vmatprep.subr.mxu0 0.0
    %2011 = vmatpush2.msra.mxu0 0.0
    %2012 = vmatprep.subr.mxu0 0.0
    %2013 = vmatpush2.msra.mxu0 0.0
    %2014 = vmatprep.subr.mxu0 0.0
    %2015 = vmatpush2.msra.mxu0 0.0
    %2016 = vmatprep.subr.mxu0 0.0
    %2017 = vmatpush2.msra.mxu0 0.0
    %2018 = vmatprep.subr.mxu0 0.0
    %2019 = vmatpush2.msra.mxu0 0.0
    %2020 = vmatprep.subr.mxu0 0.0
    %2021 = vmatpush2.msra.mxu0 0.0
    %2022 = vmatprep.subr.mxu0 0.0
    %2023 = vmatpush2.msra.mxu0 0.0
    %2024 = vmatprep.subr.mxu0 0.0
    %2025 = vmatpush2.msra.mxu0 0.0
    %2026 = vmatprep.subr.mxu0 0.0
    %2027 = vmatpush2.msra.mxu0 0.0
    %2028 = vmatprep.subr.mxu0 0.0
    %2029 = vmatpush2.msra.mxu0 0.0
    %2030 = vmatprep.subr.mxu0 0.0
    %2031 = vmatpush2.msra.mxu0 0.0
    %2032 = vmatprep.subr.mxu0 0.0
    %2033 = vmatpush2.msra.mxu0 0.0
    %2034 = vmatprep.subr.mxu0 0.0
    %2035 = vmatpush2.msra.mxu0 0.0
    %2036 = vmatprep.mubr.f32.mxu0 0.0
    %2037 = vmatmul.mubr.f32.gmra.mxu0 %v1970
    %v2038 = vpop.f32.mrf.mxu0
    %v2039 = vadd.f32 %v1968, %v2038
    %v2040 = vpop.f32.mrf.mxu0
    %2041 = vdwg.mxu0
    %v2042 = vxor.u32 %v2039, 2147483648
    %v2043 = vmul.f32 %v2042, 1.442695
    %v2044 = vpow.pop %v2043
    %v2045 = vadd.f32 %v2044, 1.0
    %v2046 = vrcp.pop %v2045
    %v2047 = vmul.f32 1.0, %v2046
    %v2048 = vtanh.pop %v2039
    %v2049 = vmul.f32 %v2047, %v1958
    %2051 = vrot.lane.b32.xlu0 %v2048, 64
    %v2052 = vpop.permute.xlu0 %2051
    %v2054 = vmul.f32 %v2047, %v2052
    %2056 = vrot.lane.b32.xlu0 %v2054, 32
    %v2057 = vpop.permute.xlu0 %2056
    %v2059 = vadd.f32 %v2049, %v2057
    %v2060 = vtanh.pop %v2059
    %2062 = vrot.lane.b32.xlu0 %v2060, 64
    %v2063 = vpop.permute.xlu0 %2062
    %v2065 = vmul.f32 %v2047, %v2063
    %v2066 = vld [vmem:[#allocation8] sm:$0xff]
    %v2067 = vld [vmem:[#allocation8 + $0x8] sm:$0xff]
    %v2068 = vld [vmem:[#allocation8 + $0x10] sm:$0xff]
    %v2069 = vld [vmem:[#allocation8 + $0x18] sm:$0xff]
    %v2070 = vld [vmem:[#allocation8 + $0x20] sm:$0xff]
    %v2071 = vld [vmem:[#allocation8 + $0x28] sm:$0xff]
    %v2072 = vld [vmem:[#allocation8 + $0x30] sm:$0xff]
    %v2073 = vld [vmem:[#allocation8 + $0x38] sm:$0xff]
    %v2074 = vld [vmem:[%s8] sm:$0x1]
    %v2076 = vlaneseq
    %v2077 = vshrl.u32 %v2076, 7
    %v2078 = vsub.s32 0, %v2077
    %v2079 = vrot.slane %v2074, %v2078
    %v2081 = vrot.slane %v1162, 6
    %v2082 = vsel %vm213, %v2081, 0
    %2084 = vmatprep.subr.mxu0 0.0
    %2085 = vmatpush1.msra.mxu0 0.0
    %2086 = vmatprep.subr.mxu0 0.0
    %2087 = vmatpush1.msra.mxu0 0.0
    %2088 = vmatprep.subr.mxu0 0.0
    %2089 = vmatpush1.msra.mxu0 0.0
    %2090 = vmatprep.subr.mxu0 0.0
    %2091 = vmatpush1.msra.mxu0 0.0
    %2092 = vmatprep.subr.mxu0 0.0
    %2093 = vmatpush1.msra.mxu0 0.0
    %2094 = vmatprep.subr.mxu0 0.0
    %2095 = vmatpush1.msra.mxu0 0.0
    %2096 = vmatprep.subr.mxu0 0.0
    %2097 = vmatpush1.msra.mxu0 0.0
    %2098 = vmatprep.subr.mxu0 0.0
    %2099 = vmatpush1.msra.mxu0 0.0
    %2100 = vmatprep.subr.mxu0 0.0
    %2101 = vmatpush1.msra.mxu0 %v2073
    %2102 = vmatprep.subr.mxu0 0.0
    %2103 = vmatpush1.msra.mxu0 %v2072
    %2104 = vmatprep.subr.mxu0 0.0
    %2105 = vmatpush1.msra.mxu0 %v2071
    %2106 = vmatprep.subr.mxu0 0.0
    %2107 = vmatpush1.msra.mxu0 %v2070
    %2108 = vmatprep.subr.mxu0 0.0
    %2109 = vmatpush1.msra.mxu0 %v2069
    %2110 = vmatprep.subr.mxu0 0.0
    %2111 = vmatpush1.msra.mxu0 %v2068
    %2112 = vmatprep.subr.mxu0 0.0
    %2113 = vmatpush1.msra.mxu0 %v2067
    %2114 = vmatprep.subr.mxu0 0.0
    %2115 = vmatpush1.msra.mxu0 %v2066
    %2116 = vmatprep.subr.mxu0 0.0
    %2117 = vmatpush2.msra.mxu0 0.0
    %2118 = vmatprep.subr.mxu0 0.0
    %2119 = vmatpush2.msra.mxu0 0.0
    %2120 = vmatprep.subr.mxu0 0.0
    %2121 = vmatpush2.msra.mxu0 0.0
    %2122 = vmatprep.subr.mxu0 0.0
    %2123 = vmatpush2.msra.mxu0 0.0
    %2124 = vmatprep.subr.mxu0 0.0
    %2125 = vmatpush2.msra.mxu0 0.0
    %2126 = vmatprep.subr.mxu0 0.0
    %2127 = vmatpush2.msra.mxu0 0.0
    %2128 = vmatprep.subr.mxu0 0.0
    %2129 = vmatpush2.msra.mxu0 0.0
    %2130 = vmatprep.subr.mxu0 0.0
    %2131 = vmatpush2.msra.mxu0 0.0
    %2132 = vmatprep.subr.mxu0 0.0
    %2133 = vmatpush2.msra.mxu0 0.0
    %2134 = vmatprep.subr.mxu0 0.0
    %2135 = vmatpush2.msra.mxu0 0.0
    %2136 = vmatprep.subr.mxu0 0.0
    %2137 = vmatpush2.msra.mxu0 0.0
    %2138 = vmatprep.subr.mxu0 0.0
    %2139 = vmatpush2.msra.mxu0 0.0
    %2140 = vmatprep.subr.mxu0 0.0
    %2141 = vmatpush2.msra.mxu0 0.0
    %2142 = vmatprep.subr.mxu0 0.0
    %2143 = vmatpush2.msra.mxu0 0.0
    %2144 = vmatprep.subr.mxu0 0.0
    %2145 = vmatpush2.msra.mxu0 0.0
    %2146 = vmatprep.subr.mxu0 0.0
    %2147 = vmatpush2.msra.mxu0 0.0
    %2148 = vmatprep.mubr.f32.mxu0 0.0
    %2149 = vmatmul.mubr.f32.gmra.mxu0 %v2082
    %v2150 = vpop.f32.mrf.mxu0
    %v2151 = vadd.f32 %v2079, %v2150
    %v2152 = vpop.f32.mrf.mxu0
    %2153 = vdwg.mxu0
    %v2154 = vxor.u32 %v2151, 2147483648
    %v2155 = vmul.f32 %v2154, 1.442695
    %v2156 = vpow.pop %v2155
    %v2157 = vadd.f32 %v2156, 1.0
    %v2158 = vrcp.pop %v2157
    %v2159 = vmul.f32 1.0, %v2158
    %v2160 = vtanh.pop %v2151
    %v2161 = vmul.f32 %v2159, 0.0
    %2163 = vrot.lane.b32.xlu0 %v2160, 64
    %v2164 = vpop.permute.xlu0 %2163
    %v2166 = vmul.f32 %v2159, %v2164
    %2168 = vrot.lane.b32.xlu0 %v2166, 32
    %v2169 = vpop.permute.xlu0 %2168
    %v2171 = vadd.f32 %v2161, %v2169
    %v2172 = vtanh.pop %v2171
    %2174 = vrot.lane.b32.xlu0 %v2172, 64
    %v2175 = vpop.permute.xlu0 %2174
    %v2177 = vmul.f32 %v2159, %v2175
    %2179 = vrot.lane.b32.xlu0 %v2065, 32
    %v2180 = vpop.permute.xlu0 %2179
    %2183 = vrot.lane.b32.xlu0 %v2177, 64
    %v2184 = vpop.permute.xlu0 %2183
    %v2186 = vsel %vm321, %v2180, %v2184
    %v2187 = vld [vmem:[%s9] sm:$0xff]
    %v2188 = vld [vmem:[%s9 + $0x8] sm:$0xff]
    %v2189 = vld [vmem:[%s9 + $0x10] sm:$0xff]
    %v2190 = vld [vmem:[%s9 + $0x18] sm:$0xff]
    %v2191 = vld [vmem:[%s9 + $0x20] sm:$0xff]
    %v2192 = vld [vmem:[%s9 + $0x28] sm:$0xff]
    %v2193 = vld [vmem:[%s9 + $0x30] sm:$0xff]
    %v2194 = vld [vmem:[%s9 + $0x38] sm:$0xff]
    %v2195 = vld [vmem:[%s10] sm:$0x1]
    %v2197 = vlaneseq
    %v2198 = vshrl.u32 %v2197, 7
    %v2199 = vsub.s32 0, %v2198
    %v2200 = vrot.slane %v2195, %v2199
    %v2203 = vsel %vm213, %v2186, 0
    %2205 = vmatprep.subr.mxu0 0.0
    %2206 = vmatpush1.msra.mxu0 0.0
    %2207 = vmatprep.subr.mxu0 0.0
    %2208 = vmatpush1.msra.mxu0 0.0
    %2209 = vmatprep.subr.mxu0 0.0
    %2210 = vmatpush1.msra.mxu0 0.0
    %2211 = vmatprep.subr.mxu0 0.0
    %2212 = vmatpush1.msra.mxu0 0.0
    %2213 = vmatprep.subr.mxu0 0.0
    %2214 = vmatpush1.msra.mxu0 0.0
    %2215 = vmatprep.subr.mxu0 0.0
    %2216 = vmatpush1.msra.mxu0 0.0
    %2217 = vmatprep.subr.mxu0 0.0
    %2218 = vmatpush1.msra.mxu0 0.0
    %2219 = vmatprep.subr.mxu0 0.0
    %2220 = vmatpush1.msra.mxu0 0.0
    %2221 = vmatprep.subr.mxu0 0.0
    %2222 = vmatpush1.msra.mxu0 %v2194
    %2223 = vmatprep.subr.mxu0 0.0
    %2224 = vmatpush1.msra.mxu0 %v2193
    %2225 = vmatprep.subr.mxu0 0.0
    %2226 = vmatpush1.msra.mxu0 %v2192
    %2227 = vmatprep.subr.mxu0 0.0
    %2228 = vmatpush1.msra.mxu0 %v2191
    %2229 = vmatprep.subr.mxu0 0.0
    %2230 = vmatpush1.msra.mxu0 %v2190
    %2231 = vmatprep.subr.mxu0 0.0
    %2232 = vmatpush1.msra.mxu0 %v2189
    %2233 = vmatprep.subr.mxu0 0.0
    %2234 = vmatpush1.msra.mxu0 %v2188
    %2235 = vmatprep.subr.mxu0 0.0
    %2236 = vmatpush1.msra.mxu0 %v2187
    %2237 = vmatprep.subr.mxu0 0.0
    %2238 = vmatpush2.msra.mxu0 0.0
    %2239 = vmatprep.subr.mxu0 0.0
    %2240 = vmatpush2.msra.mxu0 0.0
    %2241 = vmatprep.subr.mxu0 0.0
    %2242 = vmatpush2.msra.mxu0 0.0
    %2243 = vmatprep.subr.mxu0 0.0
    %2244 = vmatpush2.msra.mxu0 0.0
    %2245 = vmatprep.subr.mxu0 0.0
    %2246 = vmatpush2.msra.mxu0 0.0
    %2247 = vmatprep.subr.mxu0 0.0
    %2248 = vmatpush2.msra.mxu0 0.0
    %2249 = vmatprep.subr.mxu0 0.0
    %2250 = vmatpush2.msra.mxu0 0.0
    %2251 = vmatprep.subr.mxu0 0.0
    %2252 = vmatpush2.msra.mxu0 0.0
    %2253 = vmatprep.subr.mxu0 0.0
    %2254 = vmatpush2.msra.mxu0 0.0
    %2255 = vmatprep.subr.mxu0 0.0
    %2256 = vmatpush2.msra.mxu0 0.0
    %2257 = vmatprep.subr.mxu0 0.0
    %2258 = vmatpush2.msra.mxu0 0.0
    %2259 = vmatprep.subr.mxu0 0.0
    %2260 = vmatpush2.msra.mxu0 0.0
    %2261 = vmatprep.subr.mxu0 0.0
    %2262 = vmatpush2.msra.mxu0 0.0
    %2263 = vmatprep.subr.mxu0 0.0
    %2264 = vmatpush2.msra.mxu0 0.0
    %2265 = vmatprep.subr.mxu0 0.0
    %2266 = vmatpush2.msra.mxu0 0.0
    %2267 = vmatprep.subr.mxu0 0.0
    %2268 = vmatpush2.msra.mxu0 0.0
    %2269 = vmatprep.mubr.f32.mxu0 0.0
    %2270 = vmatmul.mubr.f32.gmra.mxu0 %v2203
    %v2271 = vpop.f32.mrf.mxu0
    %v2272 = vadd.f32 %v2200, %v2271
    %v2273 = vpop.f32.mrf.mxu0
    %2274 = vdwg.mxu0
    %v2275 = vmax.f32 %v2272, 0.0
    %vm2276 = vcmask 254976
    %2277 = vst.msk [vmem:[#allocation10] sm:$0x3] %vm2276, %v2275
    // Predicated region
    $region62: #{tpu_custom_call.1} parent=1 // pred_check
      _
    $region63: #{tpu_custom_call.1} parent=1 // pred_check_branch
      %2279 = sbr.rel (0) target = $region65
    $region64: #{tpu_custom_call.1} parent=1 // pred_region
      %s2281 = ssub.s32 32, 32
      %2282 = vsyncadd [#allocation4], %s2281
      %s2284 = sshll.u32 [#allocation10], 4
      %s2285 = int_to_ptr.vmem [resolvable:$true] %s2284
      %2287 = dma.vmem_to_hbm [thread:$0]  %s2285, 32, %s11, [#allocation4]
    $region65: #{tpu_custom_call.1} parent=1 // pred_fallthru
      _
    // Predicated region
    $region66: #{tpu_custom_call.1} parent=1 // pred_check
      _
    $region67: #{tpu_custom_call.1} parent=1 // pred_check_branch
      %2289 = sbr.rel (0) target = $region69
    $region68: #{tpu_custom_call.1} parent=1 // pred_region
      %2290 = dma.done [#allocation4], 32
    $region69: #{tpu_custom_call.1} parent=1 // pred_fallthru
      _
    %2291 = vsyncpa [#allocation3], 1
    %2292 = vsyncpa [#allocation6], 1
    %2293 = vsyncpa [#allocation9], 1
    %2294 = vsyncpa [#allocation4], 1

</llo_original>
